<compile_context>
chip_gen: v5e
topology: v5e:2x2
jax: 0.10.0
libtpu: 0.0.40
codegen_flags: <defaults>
</compile_context>

<pallas_src>
import jax
import jax.numpy as jnp
from jax.experimental import pallas as pl
from jax.experimental.pallas import tpu as pltpu

IN_FEATURES = 32 * 32 * 3          # 3072 (already a multiple of 128)
H1, H2, OUT = 120, 84, 10          # logical layer widths
H1_P, H2_P, OUT_P = 128, 128, 128  # lane-padded widths


def _round_up(x, m):
    return pl.cdiv(x, m) * m


# ----------------------------------------------------------------------------
# Pallas kernel: fused fc1+ReLU -> fc2+ReLU -> fc3
# ----------------------------------------------------------------------------
def _mlp_kernel(x_ref, w1_ref, b1_ref, w2_ref, b2_ref, w3_ref, b3_ref, o_ref):
    # x arrives as f32 from HBM; cast to bf16 in-kernel (no extra HBM pass).
    x = x_ref[...].astype(jnp.bfloat16)
    # fc1 + ReLU  (bf16 operands, f32 MXU accumulation, f32 epilogue)
    h = jnp.dot(x, w1_ref[...], preferred_element_type=jnp.float32)
    h = jnp.maximum(h + b1_ref[...], 0.0)
    # fc2 + ReLU
    h = jnp.dot(h.astype(jnp.bfloat16), w2_ref[...],
                preferred_element_type=jnp.float32)
    h = jnp.maximum(h + b2_ref[...], 0.0)
    # fc3 (no activation)
    h = jnp.dot(h.astype(jnp.bfloat16), w3_ref[...],
                preferred_element_type=jnp.float32)
    o_ref[...] = (h + b3_ref[...]).astype(o_ref.dtype)


# ----------------------------------------------------------------------------
# Parameter construction (done once, outside the forward pass)
# ----------------------------------------------------------------------------
def init_raw_params(key):
    """PyTorch-shaped (out, in) f32 weights, nn.Linear-style init."""
    def linear_init(k, out_f, in_f):
        kw, kb = jax.random.split(k)
        bound = 1.0 / jnp.sqrt(in_f)
        w = jax.random.uniform(kw, (out_f, in_f), jnp.float32, -bound, bound)
        b = jax.random.uniform(kb, (out_f,), jnp.float32, -bound, bound)
        return w, b

    k1, k2, k3 = jax.random.split(key, 3)
    w1, b1 = linear_init(k1, H1, IN_FEATURES)
    w2, b2 = linear_init(k2, H2, H1)
    w3, b3 = linear_init(k3, OUT, H2)
    return {"fc1": (w1, b1), "fc2": (w2, b2), "fc3": (w3, b3)}


def prepare_params(raw):
    """Pre-transpose to (K, N), pad K/N to TPU-friendly sizes, cast weights to
    bf16 and biases to f32 row vectors — once, so the forward pass passes
    kernel-ready buffers straight into pallas_call."""
    def prep_w(w, k_pad, n_pad):
        out_f, in_f = w.shape
        wt = jnp.pad(w.T, ((0, k_pad - in_f), (0, n_pad - out_f)))
        return wt.astype(jnp.bfloat16)

    def prep_b(b, n_pad):
        return jnp.pad(b.astype(jnp.float32),
                       (0, n_pad - b.shape[0])).reshape(1, n_pad)

    (w1, b1), (w2, b2), (w3, b3) = raw["fc1"], raw["fc2"], raw["fc3"]
    return {
        "w1": prep_w(w1, IN_FEATURES, H1_P), "b1": prep_b(b1, H1_P),
        "w2": prep_w(w2, H1_P, H2_P),        "b2": prep_b(b2, H2_P),
        "w3": prep_w(w3, H2_P, OUT_P),       "b3": prep_b(b3, OUT_P),
    }


# ----------------------------------------------------------------------------
# Forward pass
# ----------------------------------------------------------------------------
def _pick_tile(m_padded16):
    """M tile: whole batch when small; 256/512 for big batches so the grid has
    >=2 'parallel' programs (v7x dual-TC) and few per-step overheads."""
    if m_padded16 <= 256:
        return m_padded16
    if m_padded16 <= 1024:
        return 256
    return 512


def boringnet_forward(x, params):
    # torch: x.view(-1, 32*32*3) on NCHW -> identical flattening in row-major.
    x = x.reshape(-1, IN_FEATURES).astype(jnp.float32)
    M = x.shape[0]
    M16 = _round_up(M, 16)        # bf16 packs 16 rows per sublane group
    tm = _pick_tile(M16)
    Mp = _round_up(M16, tm)
    if Mp != M:                   # no-op (no pad, no cast) for aligned batches
        x = jnp.pad(x, ((0, Mp - M), (0, 0)))

    out = pl.pallas_call(
        _mlp_kernel,
        out_shape=jax.ShapeDtypeStruct((Mp, OUT_P), jnp.float32),
        grid=(Mp // tm,),
        in_specs=[
            pl.BlockSpec((tm, IN_FEATURES), lambda i: (i, 0)),
            pl.BlockSpec((IN_FEATURES, H1_P), lambda i: (0, 0)),
            pl.BlockSpec((1, H1_P), lambda i: (0, 0)),
            pl.BlockSpec((H1_P, H2_P), lambda i: (0, 0)),
            pl.BlockSpec((1, H2_P), lambda i: (0, 0)),
            pl.BlockSpec((H2_P, OUT_P), lambda i: (0, 0)),
            pl.BlockSpec((1, OUT_P), lambda i: (0, 0)),
        ],
        out_specs=pl.BlockSpec((tm, OUT_P), lambda i: (i, 0)),
        compiler_params=pltpu.CompilerParams(
            dimension_semantics=("parallel",),
            vmem_limit_bytes=32 * 1024 * 1024,   # plenty; safe on v7x (64 MiB)
        ),
    )(x, params["w1"], params["b1"], params["w2"], params["b2"],
      params["w3"], params["b3"])
    return out[:M, :OUT]


def reference_forward(x, raw):
    """Pure-JAX f32 reference of BoringNet.forward (eval semantics)."""
    (w1, b1), (w2, b2), (w3, b3) = raw["fc1"], raw["fc2"], raw["fc3"]
    h = x.reshape(-1, IN_FEATURES).astype(jnp.float32)
    h = jnp.maximum(h @ w1.T + b1, 0.0)
    h = jnp.maximum(h @ w2.T + b2, 0.0)
    return h @ w3.T + b3


if __name__ == "__main__":
    key = jax.random.PRNGKey(0)
    k_x, k_p = jax.random.split(key)

    # BoringNet expects 32*32*3 features per sample; keep batch small.
    x = jax.random.normal(k_x, (2, 3, 32, 32), jnp.float32)

    raw_params = init_raw_params(k_p)
    params = prepare_params(raw_params)     # one-time weight prep (bf16, K,N)

    out = boringnet_forward(x, params)
    out = jax.block_until_ready(out)
    assert out.shape == (2, OUT), out.shape

    # Loose tolerance: bf16 operands with f32 accumulation.
    ref = reference_forward(x, raw_params)
    max_err = float(jnp.max(jnp.abs(out - ref)))
    assert max_err < 0.25, f"max abs error {max_err}"

    print("KERNEL_OK")
</pallas_src>

<mosaic_0001>
module attributes {stable_mosaic.version = 11 : i64} {
  func.func @_mlp_kernel(%arg0: i32, %arg1: memref<16x3072xf32, #tpu.memory_space<vmem>>, %arg2: memref<3072x128xbf16, #tpu.memory_space<vmem>>, %arg3: memref<1x128xf32, #tpu.memory_space<vmem>>, %arg4: memref<128x128xbf16, #tpu.memory_space<vmem>>, %arg5: memref<1x128xf32, #tpu.memory_space<vmem>>, %arg6: memref<128x128xbf16, #tpu.memory_space<vmem>>, %arg7: memref<1x128xf32, #tpu.memory_space<vmem>>, %arg8: memref<16x128xf32, #tpu.memory_space<vmem>>) attributes {dimension_semantics = [#tpu.dimension_semantics<parallel>], iteration_bounds = array<i64: 1>, scalar_prefetch = 0 : i64, scratch_operands = 0 : i64, tpu.core_type = #tpu.core_type<tc>, window_params = [{transform_indices = @transform_0, window_bounds = array<i64: 16, 3072>}, {pipeline_mode = #tpu.pipeline_mode<synchronous>, transform_indices = @transform_1, window_bounds = array<i64: 3072, 128>}, {pipeline_mode = #tpu.pipeline_mode<synchronous>, transform_indices = @transform_2, window_bounds = array<i64: 1, 128>}, {pipeline_mode = #tpu.pipeline_mode<synchronous>, transform_indices = @transform_3, window_bounds = array<i64: 128, 128>}, {pipeline_mode = #tpu.pipeline_mode<synchronous>, transform_indices = @transform_4, window_bounds = array<i64: 1, 128>}, {pipeline_mode = #tpu.pipeline_mode<synchronous>, transform_indices = @transform_5, window_bounds = array<i64: 128, 128>}, {pipeline_mode = #tpu.pipeline_mode<synchronous>, transform_indices = @transform_6, window_bounds = array<i64: 1, 128>}, {transform_indices = @transform_7, window_bounds = array<i64: 16, 128>}]} {
    %c0 = arith.constant 0 : index
    %c0_0 = arith.constant 0 : index
    %0 = vector.load %arg1[%c0, %c0_0] : memref<16x3072xf32, #tpu.memory_space<vmem>>, vector<16x3072xf32>
    %1 = arith.truncf %0 : vector<16x3072xf32> to vector<16x3072xbf16>
    %c0_1 = arith.constant 0 : index
    %c0_2 = arith.constant 0 : index
    %2 = vector.load %arg2[%c0_1, %c0_2] : memref<3072x128xbf16, #tpu.memory_space<vmem>>, vector<3072x128xbf16>
    %cst = arith.constant dense<0.000000e+00> : vector<16x128xf32>
    %3 = tpu.matmul %1, %2, %cst {dimension_numbers = #tpu.dot_dimension_numbers<[1], [0], [0], [1], [0, 0, 1, 1], [], []>} : vector<16x3072xbf16>, vector<3072x128xbf16>, vector<16x128xf32> -> vector<16x128xf32>
    %c0_3 = arith.constant 0 : index
    %c0_4 = arith.constant 0 : index
    %4 = vector.load %arg3[%c0_3, %c0_4] : memref<1x128xf32, #tpu.memory_space<vmem>>, vector<1x128xf32>
    %5 = vector.broadcast %4 : vector<1x128xf32> to vector<16x128xf32>
    %6 = arith.addf %3, %5 : vector<16x128xf32>
    %cst_5 = arith.constant 0.000000e+00 : f32
    %7 = vector.broadcast %cst_5 : f32 to vector<16x128xf32>
    %8 = arith.maximumf %6, %7 : vector<16x128xf32>
    %9 = arith.truncf %8 : vector<16x128xf32> to vector<16x128xbf16>
    %c0_6 = arith.constant 0 : index
    %c0_7 = arith.constant 0 : index
    %10 = vector.load %arg4[%c0_6, %c0_7] : memref<128x128xbf16, #tpu.memory_space<vmem>>, vector<128x128xbf16>
    %cst_8 = arith.constant dense<0.000000e+00> : vector<16x128xf32>
    %11 = tpu.matmul %9, %10, %cst_8 {dimension_numbers = #tpu.dot_dimension_numbers<[1], [0], [0], [1], [0, 0, 1, 1], [], []>} : vector<16x128xbf16>, vector<128x128xbf16>, vector<16x128xf32> -> vector<16x128xf32>
    %c0_9 = arith.constant 0 : index
    %c0_10 = arith.constant 0 : index
    %12 = vector.load %arg5[%c0_9, %c0_10] : memref<1x128xf32, #tpu.memory_space<vmem>>, vector<1x128xf32>
    %13 = vector.broadcast %12 : vector<1x128xf32> to vector<16x128xf32>
    %14 = arith.addf %11, %13 : vector<16x128xf32>
    %cst_11 = arith.constant 0.000000e+00 : f32
    %15 = vector.broadcast %cst_11 : f32 to vector<16x128xf32>
    %16 = arith.maximumf %14, %15 : vector<16x128xf32>
    %17 = arith.truncf %16 : vector<16x128xf32> to vector<16x128xbf16>
    %c0_12 = arith.constant 0 : index
    %c0_13 = arith.constant 0 : index
    %18 = vector.load %arg6[%c0_12, %c0_13] : memref<128x128xbf16, #tpu.memory_space<vmem>>, vector<128x128xbf16>
    %cst_14 = arith.constant dense<0.000000e+00> : vector<16x128xf32>
    %19 = tpu.matmul %17, %18, %cst_14 {dimension_numbers = #tpu.dot_dimension_numbers<[1], [0], [0], [1], [0, 0, 1, 1], [], []>} : vector<16x128xbf16>, vector<128x128xbf16>, vector<16x128xf32> -> vector<16x128xf32>
    %c0_15 = arith.constant 0 : index
    %c0_16 = arith.constant 0 : index
    %20 = vector.load %arg7[%c0_15, %c0_16] : memref<1x128xf32, #tpu.memory_space<vmem>>, vector<1x128xf32>
    %21 = vector.broadcast %20 : vector<1x128xf32> to vector<16x128xf32>
    %22 = arith.addf %19, %21 : vector<16x128xf32>
    %c0_17 = arith.constant 0 : index
    %c0_18 = arith.constant 0 : index
    %23 = vector.load %arg8[%c0_17, %c0_18] : memref<16x128xf32, #tpu.memory_space<vmem>>, vector<16x128xf32>
    tpu.vector_store %arg8[%c0_17, %c0_18], %22 {strides = array<i32>} : memref<16x128xf32, #tpu.memory_space<vmem>>, vector<16x128xf32>,
    return
  }
  func.func @transform_0(%arg0: i32) -> (i32, i32) {
    %c0_i32 = arith.constant 0 : i32
    %c0_i32_0 = arith.constant 0 : i32
    return %arg0, %c0_i32 : i32, i32
  }
  func.func @transform_1(%arg0: i32) -> (i32, i32) {
    %c0_i32 = arith.constant 0 : i32
    %c0_i32_0 = arith.constant 0 : i32
    %c0_i32_1 = arith.constant 0 : i32
    return %c0_i32, %c0_i32_0 : i32, i32
  }
  func.func @transform_2(%arg0: i32) -> (i32, i32) {
    %c0_i32 = arith.constant 0 : i32
    %c0_i32_0 = arith.constant 0 : i32
    %c0_i32_1 = arith.constant 0 : i32
    return %c0_i32, %c0_i32_0 : i32, i32
  }
  func.func @transform_3(%arg0: i32) -> (i32, i32) {
    %c0_i32 = arith.constant 0 : i32
    %c0_i32_0 = arith.constant 0 : i32
    %c0_i32_1 = arith.constant 0 : i32
    return %c0_i32, %c0_i32_0 : i32, i32
  }
  func.func @transform_4(%arg0: i32) -> (i32, i32) {
    %c0_i32 = arith.constant 0 : i32
    %c0_i32_0 = arith.constant 0 : i32
    %c0_i32_1 = arith.constant 0 : i32
    return %c0_i32, %c0_i32_0 : i32, i32
  }
  func.func @transform_5(%arg0: i32) -> (i32, i32) {
    %c0_i32 = arith.constant 0 : i32
    %c0_i32_0 = arith.constant 0 : i32
    %c0_i32_1 = arith.constant 0 : i32
    return %c0_i32, %c0_i32_0 : i32, i32
  }
  func.func @transform_6(%arg0: i32) -> (i32, i32) {
    %c0_i32 = arith.constant 0 : i32
    %c0_i32_0 = arith.constant 0 : i32
    %c0_i32_1 = arith.constant 0 : i32
    return %c0_i32, %c0_i32_0 : i32, i32
  }
  func.func @transform_7(%arg0: i32) -> (i32, i32) {
    %c0_i32 = arith.constant 0 : i32
    %c0_i32_0 = arith.constant 0 : i32
    return %arg0, %c0_i32 : i32, i32
  }
}

</mosaic_0001>

<llo_original>
// kernel: tpu_custom_call.1
$region0: #{tpu_custom_call.1}
  #allocation0 [shape = 'u32[]', space=smem, size = 0x4, offset = 0x4, fixed_abs, tag = 'smem constant byte address 0x4 - core index']
  #allocation1 [shape = 'u32[72,128]{1,0:T(1,128)}', space=vmem, size = 0x9000, scoped, tag = 'internal scratch']
  %s0 = inlined_call_operand.hbm [shape: f32[16,3072], index: 0, kind: input, shape index: {}]
  %s1 = inlined_call_operand.hbm [shape: bf16[3072,128], index: 1, kind: input, shape index: {}]
  %s2 = inlined_call_operand.vmem [shape: f32[1,128], index: 2, kind: input, shape index: {}]
  %s3 = inlined_call_operand.hbm [shape: bf16[128,128], index: 3, kind: input, shape index: {}]
  %s4 = inlined_call_operand.vmem [shape: f32[1,128], index: 4, kind: input, shape index: {}]
  %s5 = inlined_call_operand.hbm [shape: bf16[128,128], index: 5, kind: input, shape index: {}]
  %s6 = inlined_call_operand.vmem [shape: f32[1,128], index: 6, kind: input, shape index: {}]
  %s7 = inlined_call_operand.hbm [shape: f32[16,128], index: 7, kind: output, shape index: {}]
  %s8 = sld [smem:[#allocation0]]
  $region54: #{tpu_custom_call.1} parent=0
    _
  %s10 = ssub.s32 1, %s8
  %s11 = scalar_select 0, %s10, %s8
  $region1: #{tpu_custom_call.1} parent=0
    #allocation2 [shape = 'u8[196608]{0}', space=vmem, size = 0x30000, scoped, tag = 'input window, operand 0, single buffered']
    #allocation3 [shape = 's32[1]{0}', space=sflag, size = 0x4, scoped, tag = 'scoped memory for tpu_custom_call.1']
    #allocation4 [shape = 's32[1]{0}', space=sflag, size = 0x4, scoped, tag = 'scoped memory for tpu_custom_call.1']
    #allocation5 [shape = 'u8[786432]{0}', space=vmem, size = 0xc0000, scoped, tag = 'input window, operand 1, single buffered']
    #allocation6 [shape = 's32[1]{0}', space=sflag, size = 0x4, scoped, tag = 'scoped memory for tpu_custom_call.1']
    #allocation7 [shape = 'u8[32768]{0}', space=vmem, size = 0x8000, scoped, tag = 'input window, operand 3, single buffered']
    #allocation8 [shape = 'u8[32768]{0}', space=vmem, size = 0x8000, scoped, tag = 'input window, operand 5, single buffered']
    #allocation9 [shape = 's32[1]{0}', space=sflag, size = 0x4, scoped, tag = 'scoped memory for tpu_custom_call.1']
    #allocation10 [shape = 'u8[8192]{0}', space=vmem, size = 0x2000, scoped, tag = 'output window, operand 0, single buffered']
    %12 = vsyncpa [#allocation3], 0
    %13 = vsyncpa [#allocation6], 0
    %14 = vsyncpa [#allocation9], 0
    %15 = vsyncpa [#allocation4], 0
    // Predicated region
    $region2: #{tpu_custom_call.1} parent=1 // pred_check
      _
    $region3: #{tpu_custom_call.1} parent=1 // pred_check_branch
      %17 = sbr.rel (0) target = $region5
    $region4: #{tpu_custom_call.1} parent=1 // pred_region
      %19 = vsyncadd [#allocation3], 0
      %s20 = sshll.u32 %s0, 4
      %s21 = int_to_ptr.hbm [resolvable:$true] %s20
      %s22 = sshll.u32 [#allocation2], 4
      %s23 = int_to_ptr.vmem [resolvable:$true] %s22
      %28 = dma.hbm_to_vmem [thread:$0]  %s21, 6144, %s23, [#allocation3], 3072, 3072, 192
    $region5: #{tpu_custom_call.1} parent=1 // pred_fallthru
      _
    // Predicated region
    $region6: #{tpu_custom_call.1} parent=1 // pred_check
      _
    $region7: #{tpu_custom_call.1} parent=1 // pred_check_branch
      %30 = sbr.rel (0) target = $region9
    $region8: #{tpu_custom_call.1} parent=1 // pred_region
      %32 = vsyncadd [#allocation6], 0
      %s33 = sshll.u32 %s1, 4
      %s34 = int_to_ptr.hbm [resolvable:$true] %s33
      %s35 = sshll.u32 [#allocation5], 4
      %s36 = int_to_ptr.vmem [resolvable:$true] %s35
      %41 = dma.hbm_to_vmem [thread:$0]  %s34, 24576, %s36, [#allocation6], 64, 64, 4
    $region9: #{tpu_custom_call.1} parent=1 // pred_fallthru
      _
    // Predicated region
    $region10: #{tpu_custom_call.1} parent=1 // pred_check
      _
    $region11: #{tpu_custom_call.1} parent=1 // pred_check_branch
      %43 = sbr.rel (0) target = $region13
    $region12: #{tpu_custom_call.1} parent=1 // pred_region
      _
    $region13: #{tpu_custom_call.1} parent=1 // pred_fallthru
      _
    // Predicated region
    $region14: #{tpu_custom_call.1} parent=1 // pred_check
      _
    $region15: #{tpu_custom_call.1} parent=1 // pred_check_branch
      %45 = sbr.rel (0) target = $region17
    $region16: #{tpu_custom_call.1} parent=1 // pred_region
      %47 = vsyncadd [#allocation6], 0
      %s48 = sshll.u32 %s3, 4
      %s49 = int_to_ptr.hbm [resolvable:$true] %s48
      %s50 = sshll.u32 [#allocation7], 4
      %s51 = int_to_ptr.vmem [resolvable:$true] %s50
      %56 = dma.hbm_to_vmem [thread:$0]  %s49, 1024, %s51, [#allocation6], 64, 64, 4
    $region17: #{tpu_custom_call.1} parent=1 // pred_fallthru
      _
    // Predicated region
    $region18: #{tpu_custom_call.1} parent=1 // pred_check
      _
    $region19: #{tpu_custom_call.1} parent=1 // pred_check_branch
      %58 = sbr.rel (0) target = $region21
    $region20: #{tpu_custom_call.1} parent=1 // pred_region
      _
    $region21: #{tpu_custom_call.1} parent=1 // pred_fallthru
      _
    // Predicated region
    $region22: #{tpu_custom_call.1} parent=1 // pred_check
      _
    $region23: #{tpu_custom_call.1} parent=1 // pred_check_branch
      %60 = sbr.rel (0) target = $region25
    $region24: #{tpu_custom_call.1} parent=1 // pred_region
      %62 = vsyncadd [#allocation9], 0
      %s63 = sshll.u32 %s5, 4
      %s64 = int_to_ptr.hbm [resolvable:$true] %s63
      %s65 = sshll.u32 [#allocation8], 4
      %s66 = int_to_ptr.vmem [resolvable:$true] %s65
      %71 = dma.hbm_to_vmem [thread:$0]  %s64, 1024, %s66, [#allocation9], 64, 64, 4
    $region25: #{tpu_custom_call.1} parent=1 // pred_fallthru
      _
    // Predicated region
    $region26: #{tpu_custom_call.1} parent=1 // pred_check
      _
    $region27: #{tpu_custom_call.1} parent=1 // pred_check_branch
      %73 = sbr.rel (0) target = $region29
    $region28: #{tpu_custom_call.1} parent=1 // pred_region
      _
    $region29: #{tpu_custom_call.1} parent=1 // pred_fallthru
      _
    // Predicated region
    $region30: #{tpu_custom_call.1} parent=1 // pred_check
      _
    $region31: #{tpu_custom_call.1} parent=1 // pred_check_branch
      %75 = sbr.rel (0) target = $region33
    $region32: #{tpu_custom_call.1} parent=1 // pred_region
      %77 = dma.done [#allocation3], 6144
    $region33: #{tpu_custom_call.1} parent=1 // pred_fallthru
      _
    // Predicated region
    $region34: #{tpu_custom_call.1} parent=1 // pred_check
      _
    $region35: #{tpu_custom_call.1} parent=1 // pred_check_branch
      %79 = sbr.rel (0) target = $region37
    $region36: #{tpu_custom_call.1} parent=1 // pred_region
      %81 = dma.done [#allocation6], 24576
    $region37: #{tpu_custom_call.1} parent=1 // pred_fallthru
      _
    // Predicated region
    $region38: #{tpu_custom_call.1} parent=1 // pred_check
      _
    $region39: #{tpu_custom_call.1} parent=1 // pred_check_branch
      %83 = sbr.rel (0) target = $region41
    $region40: #{tpu_custom_call.1} parent=1 // pred_region
      %85 = dma.done [#allocation6], 1024
    $region41: #{tpu_custom_call.1} parent=1 // pred_fallthru
      _
    // Predicated region
    $region42: #{tpu_custom_call.1} parent=1 // pred_check
      _
    $region43: #{tpu_custom_call.1} parent=1 // pred_check_branch
      %87 = sbr.rel (0) target = $region45
    $region44: #{tpu_custom_call.1} parent=1 // pred_region
      %89 = dma.done [#allocation9], 1024
    $region45: #{tpu_custom_call.1} parent=1 // pred_fallthru
      _
    %v90 = vld [vmem:[#allocation2] sm:$0xff]
    %v91 = vld [vmem:[#allocation2 + $0x8] sm:$0xff]
    %v92 = vld [vmem:[#allocation2 + $0x10] sm:$0xff]
    %v93 = vld [vmem:[#allocation2 + $0x18] sm:$0xff]
    %v94 = vld [vmem:[#allocation2 + $0x20] sm:$0xff]
    %v95 = vld [vmem:[#allocation2 + $0x28] sm:$0xff]
    %v96 = vld [vmem:[#allocation2 + $0x30] sm:$0xff]
    %v97 = vld [vmem:[#allocation2 + $0x38] sm:$0xff]
    %v98 = vld [vmem:[#allocation2 + $0x40] sm:$0xff]
    %v99 = vld [vmem:[#allocation2 + $0x48] sm:$0xff]
    %v100 = vld [vmem:[#allocation2 + $0x50] sm:$0xff]
    %v101 = vld [vmem:[#allocation2 + $0x58] sm:$0xff]
    %v102 = vld [vmem:[#allocation2 + $0x60] sm:$0xff]
    %v103 = vld [vmem:[#allocation2 + $0x68] sm:$0xff]
    %v104 = vld [vmem:[#allocation2 + $0x70] sm:$0xff]
    %v105 = vld [vmem:[#allocation2 + $0x78] sm:$0xff]
    %v106 = vld [vmem:[#allocation2 + $0x80] sm:$0xff]
    %v107 = vld [vmem:[#allocation2 + $0x88] sm:$0xff]
    %v108 = vld [vmem:[#allocation2 + $0x90] sm:$0xff]
    %v109 = vld [vmem:[#allocation2 + $0x98] sm:$0xff]
    %v110 = vld [vmem:[#allocation2 + $0xa0] sm:$0xff]
    %v111 = vld [vmem:[#allocation2 + $0xa8] sm:$0xff]
    %v112 = vld [vmem:[#allocation2 + $0xb0] sm:$0xff]
    %v113 = vld [vmem:[#allocation2 + $0xb8] sm:$0xff]
    %v114 = vld [vmem:[#allocation2 + $0xc0] sm:$0xff]
    %v115 = vld [vmem:[#allocation2 + $0xc8] sm:$0xff]
    %v116 = vld [vmem:[#allocation2 + $0xd0] sm:$0xff]
    %v117 = vld [vmem:[#allocation2 + $0xd8] sm:$0xff]
    %v118 = vld [vmem:[#allocation2 + $0xe0] sm:$0xff]
    %v119 = vld [vmem:[#allocation2 + $0xe8] sm:$0xff]
    %v120 = vld [vmem:[#allocation2 + $0xf0] sm:$0xff]
    %v121 = vld [vmem:[#allocation2 + $0xf8] sm:$0xff]
    %v122 = vld [vmem:[#allocation2 + $0x100] sm:$0xff]
    %v123 = vld [vmem:[#allocation2 + $0x108] sm:$0xff]
    %v124 = vld [vmem:[#allocation2 + $0x110] sm:$0xff]
    %v125 = vld [vmem:[#allocation2 + $0x118] sm:$0xff]
    %v126 = vld [vmem:[#allocation2 + $0x120] sm:$0xff]
    %v127 = vld [vmem:[#allocation2 + $0x128] sm:$0xff]
    %v128 = vld [vmem:[#allocation2 + $0x130] sm:$0xff]
    %v129 = vld [vmem:[#allocation2 + $0x138] sm:$0xff]
    %v130 = vld [vmem:[#allocation2 + $0x140] sm:$0xff]
    %v131 = vld [vmem:[#allocation2 + $0x148] sm:$0xff]
    %v132 = vld [vmem:[#allocation2 + $0x150] sm:$0xff]
    %v133 = vld [vmem:[#allocation2 + $0x158] sm:$0xff]
    %v134 = vld [vmem:[#allocation2 + $0x160] sm:$0xff]
    %v135 = vld [vmem:[#allocation2 + $0x168] sm:$0xff]
    %v136 = vld [vmem:[#allocation2 + $0x170] sm:$0xff]
    %v137 = vld [vmem:[#allocation2 + $0x178] sm:$0xff]
    %v138 = vpack.c.bf16 %v114, %v90
    %v139 = vpack.c.bf16 %v115, %v91
    %v140 = vpack.c.bf16 %v116, %v92
    %v141 = vpack.c.bf16 %v117, %v93
    %v142 = vpack.c.bf16 %v118, %v94
    %v143 = vpack.c.bf16 %v119, %v95
    %v144 = vpack.c.bf16 %v120, %v96
    %v145 = vpack.c.bf16 %v121, %v97
    %v146 = vpack.c.bf16 %v122, %v98
    %v147 = vpack.c.bf16 %v123, %v99
    %v148 = vpack.c.bf16 %v124, %v100
    %v149 = vpack.c.bf16 %v125, %v101
    %v150 = vpack.c.bf16 %v126, %v102
    %v151 = vpack.c.bf16 %v127, %v103
    %v152 = vpack.c.bf16 %v128, %v104
    %v153 = vpack.c.bf16 %v129, %v105
    %v154 = vpack.c.bf16 %v130, %v106
    %v155 = vpack.c.bf16 %v131, %v107
    %v156 = vpack.c.bf16 %v132, %v108
    %v157 = vpack.c.bf16 %v133, %v109
    %v158 = vpack.c.bf16 %v134, %v110
    %v159 = vpack.c.bf16 %v135, %v111
    %v160 = vpack.c.bf16 %v136, %v112
    %v161 = vpack.c.bf16 %v137, %v113
    %v162 = vld [vmem:[#allocation5] sm:$0xf]
    %v163 = vld [vmem:[#allocation5 + $0x4] sm:$0xf]
    %v164 = vld [vmem:[#allocation5 + $0x8] sm:$0xf]
    %v165 = vld [vmem:[#allocation5 + $0xc] sm:$0xf]
    %v166 = vld [vmem:[#allocation5 + $0x10] sm:$0xf]
    %v167 = vld [vmem:[#allocation5 + $0x14] sm:$0xf]
    %v168 = vld [vmem:[#allocation5 + $0x18] sm:$0xf]
    %v169 = vld [vmem:[#allocation5 + $0x1c] sm:$0xf]
    %v170 = vld [vmem:[#allocation5 + $0x20] sm:$0xf]
    %v171 = vld [vmem:[#allocation5 + $0x24] sm:$0xf]
    %v172 = vld [vmem:[#allocation5 + $0x28] sm:$0xf]
    %v173 = vld [vmem:[#allocation5 + $0x2c] sm:$0xf]
    %v174 = vld [vmem:[#allocation5 + $0x30] sm:$0xf]
    %v175 = vld [vmem:[#allocation5 + $0x34] sm:$0xf]
    %v176 = vld [vmem:[#allocation5 + $0x38] sm:$0xf]
    %v177 = vld [vmem:[#allocation5 + $0x3c] sm:$0xf]
    %v178 = vld [vmem:[#allocation5 + $0x40] sm:$0xf]
    %v179 = vld [vmem:[#allocation5 + $0x44] sm:$0xf]
    %v180 = vld [vmem:[#allocation5 + $0x48] sm:$0xf]
    %v181 = vld [vmem:[#allocation5 + $0x4c] sm:$0xf]
    %v182 = vld [vmem:[#allocation5 + $0x50] sm:$0xf]
    %v183 = vld [vmem:[#allocation5 + $0x54] sm:$0xf]
    %v184 = vld [vmem:[#allocation5 + $0x58] sm:$0xf]
    %v185 = vld [vmem:[#allocation5 + $0x5c] sm:$0xf]
    %v186 = vld [vmem:[#allocation5 + $0x60] sm:$0xf]
    %v187 = vld [vmem:[#allocation5 + $0x64] sm:$0xf]
    %v188 = vld [vmem:[#allocation5 + $0x68] sm:$0xf]
    %v189 = vld [vmem:[#allocation5 + $0x6c] sm:$0xf]
    %v190 = vld [vmem:[#allocation5 + $0x70] sm:$0xf]
    %v191 = vld [vmem:[#allocation5 + $0x74] sm:$0xf]
    %v192 = vld [vmem:[#allocation5 + $0x78] sm:$0xf]
    %v193 = vld [vmem:[#allocation5 + $0x7c] sm:$0xf]
    %v194 = vld [vmem:[#allocation5 + $0x80] sm:$0xf]
    %v195 = vld [vmem:[#allocation5 + $0x84] sm:$0xf]
    %v196 = vld [vmem:[#allocation5 + $0x88] sm:$0xf]
    %v197 = vld [vmem:[#allocation5 + $0x8c] sm:$0xf]
    %v198 = vld [vmem:[#allocation5 + $0x90] sm:$0xf]
    %v199 = vld [vmem:[#allocation5 + $0x94] sm:$0xf]
    %v200 = vld [vmem:[#allocation5 + $0x98] sm:$0xf]
    %v201 = vld [vmem:[#allocation5 + $0x9c] sm:$0xf]
    %v202 = vld [vmem:[#allocation5 + $0xa0] sm:$0xf]
    %v203 = vld [vmem:[#allocation5 + $0xa4] sm:$0xf]
    %v204 = vld [vmem:[#allocation5 + $0xa8] sm:$0xf]
    %v205 = vld [vmem:[#allocation5 + $0xac] sm:$0xf]
    %v206 = vld [vmem:[#allocation5 + $0xb0] sm:$0xf]
    %v207 = vld [vmem:[#allocation5 + $0xb4] sm:$0xf]
    %v208 = vld [vmem:[#allocation5 + $0xb8] sm:$0xf]
    %v209 = vld [vmem:[#allocation5 + $0xbc] sm:$0xf]
    %v210 = vld [vmem:[#allocation5 + $0xc0] sm:$0xf]
    %v211 = vld [vmem:[#allocation5 + $0xc4] sm:$0xf]
    %v212 = vld [vmem:[#allocation5 + $0xc8] sm:$0xf]
    %v213 = vld [vmem:[#allocation5 + $0xcc] sm:$0xf]
    %v214 = vld [vmem:[#allocation5 + $0xd0] sm:$0xf]
    %v215 = vld [vmem:[#allocation5 + $0xd4] sm:$0xf]
    %v216 = vld [vmem:[#allocation5 + $0xd8] sm:$0xf]
    %v217 = vld [vmem:[#allocation5 + $0xdc] sm:$0xf]
    %v218 = vld [vmem:[#allocation5 + $0xe0] sm:$0xf]
    %v219 = vld [vmem:[#allocation5 + $0xe4] sm:$0xf]
    %v220 = vld [vmem:[#allocation5 + $0xe8] sm:$0xf]
    %v221 = vld [vmem:[#allocation5 + $0xec] sm:$0xf]
    %v222 = vld [vmem:[#allocation5 + $0xf0] sm:$0xf]
    %v223 = vld [vmem:[#allocation5 + $0xf4] sm:$0xf]
    %v224 = vld [vmem:[#allocation5 + $0xf8] sm:$0xf]
    %v225 = vld [vmem:[#allocation5 + $0xfc] sm:$0xf]
    %v226 = vld [vmem:[#allocation5 + $0x100] sm:$0xf]
    %v227 = vld [vmem:[#allocation5 + $0x104] sm:$0xf]
    %v228 = vld [vmem:[#allocation5 + $0x108] sm:$0xf]
    %v229 = vld [vmem:[#allocation5 + $0x10c] sm:$0xf]
    %v230 = vld [vmem:[#allocation5 + $0x110] sm:$0xf]
    %v231 = vld [vmem:[#allocation5 + $0x114] sm:$0xf]
    %v232 = vld [vmem:[#allocation5 + $0x118] sm:$0xf]
    %v233 = vld [vmem:[#allocation5 + $0x11c] sm:$0xf]
    %v234 = vld [vmem:[#allocation5 + $0x120] sm:$0xf]
    %v235 = vld [vmem:[#allocation5 + $0x124] sm:$0xf]
    %v236 = vld [vmem:[#allocation5 + $0x128] sm:$0xf]
    %v237 = vld [vmem:[#allocation5 + $0x12c] sm:$0xf]
    %v238 = vld [vmem:[#allocation5 + $0x130] sm:$0xf]
    %v239 = vld [vmem:[#allocation5 + $0x134] sm:$0xf]
    %v240 = vld [vmem:[#allocation5 + $0x138] sm:$0xf]
    %v241 = vld [vmem:[#allocation5 + $0x13c] sm:$0xf]
    %v242 = vld [vmem:[#allocation5 + $0x140] sm:$0xf]
    %v243 = vld [vmem:[#allocation5 + $0x144] sm:$0xf]
    %v244 = vld [vmem:[#allocation5 + $0x148] sm:$0xf]
    %v245 = vld [vmem:[#allocation5 + $0x14c] sm:$0xf]
    %v246 = vld [vmem:[#allocation5 + $0x150] sm:$0xf]
    %v247 = vld [vmem:[#allocation5 + $0x154] sm:$0xf]
    %v248 = vld [vmem:[#allocation5 + $0x158] sm:$0xf]
    %v249 = vld [vmem:[#allocation5 + $0x15c] sm:$0xf]
    %v250 = vld [vmem:[#allocation5 + $0x160] sm:$0xf]
    %v251 = vld [vmem:[#allocation5 + $0x164] sm:$0xf]
    %v252 = vld [vmem:[#allocation5 + $0x168] sm:$0xf]
    %v253 = vld [vmem:[#allocation5 + $0x16c] sm:$0xf]
    %v254 = vld [vmem:[#allocation5 + $0x170] sm:$0xf]
    %v255 = vld [vmem:[#allocation5 + $0x174] sm:$0xf]
    %v256 = vld [vmem:[#allocation5 + $0x178] sm:$0xf]
    %v257 = vld [vmem:[#allocation5 + $0x17c] sm:$0xf]
    %v258 = vld [vmem:[#allocation5 + $0x180] sm:$0xf]
    %v259 = vld [vmem:[#allocation5 + $0x184] sm:$0xf]
    %v260 = vld [vmem:[#allocation5 + $0x188] sm:$0xf]
    %v261 = vld [vmem:[#allocation5 + $0x18c] sm:$0xf]
    %v262 = vld [vmem:[#allocation5 + $0x190] sm:$0xf]
    %v263 = vld [vmem:[#allocation5 + $0x194] sm:$0xf]
    %v264 = vld [vmem:[#allocation5 + $0x198] sm:$0xf]
    %v265 = vld [vmem:[#allocation5 + $0x19c] sm:$0xf]
    %v266 = vld [vmem:[#allocation5 + $0x1a0] sm:$0xf]
    %v267 = vld [vmem:[#allocation5 + $0x1a4] sm:$0xf]
    %v268 = vld [vmem:[#allocation5 + $0x1a8] sm:$0xf]
    %v269 = vld [vmem:[#allocation5 + $0x1ac] sm:$0xf]
    %v270 = vld [vmem:[#allocation5 + $0x1b0] sm:$0xf]
    %v271 = vld [vmem:[#allocation5 + $0x1b4] sm:$0xf]
    %v272 = vld [vmem:[#allocation5 + $0x1b8] sm:$0xf]
    %v273 = vld [vmem:[#allocation5 + $0x1bc] sm:$0xf]
    %v274 = vld [vmem:[#allocation5 + $0x1c0] sm:$0xf]
    %v275 = vld [vmem:[#allocation5 + $0x1c4] sm:$0xf]
    %v276 = vld [vmem:[#allocation5 + $0x1c8] sm:$0xf]
    %v277 = vld [vmem:[#allocation5 + $0x1cc] sm:$0xf]
    %v278 = vld [vmem:[#allocation5 + $0x1d0] sm:$0xf]
    %v279 = vld [vmem:[#allocation5 + $0x1d4] sm:$0xf]
    %v280 = vld [vmem:[#allocation5 + $0x1d8] sm:$0xf]
    %v281 = vld [vmem:[#allocation5 + $0x1dc] sm:$0xf]
    %v282 = vld [vmem:[#allocation5 + $0x1e0] sm:$0xf]
    %v283 = vld [vmem:[#allocation5 + $0x1e4] sm:$0xf]
    %v284 = vld [vmem:[#allocation5 + $0x1e8] sm:$0xf]
    %v285 = vld [vmem:[#allocation5 + $0x1ec] sm:$0xf]
    %v286 = vld [vmem:[#allocation5 + $0x1f0] sm:$0xf]
    %v287 = vld [vmem:[#allocation5 + $0x1f4] sm:$0xf]
    %v288 = vld [vmem:[#allocation5 + $0x1f8] sm:$0xf]
    %v289 = vld [vmem:[#allocation5 + $0x1fc] sm:$0xf]
    %v290 = vld [vmem:[#allocation5 + $0x200] sm:$0xf]
    %v291 = vld [vmem:[#allocation5 + $0x204] sm:$0xf]
    %v292 = vld [vmem:[#allocation5 + $0x208] sm:$0xf]
    %v293 = vld [vmem:[#allocation5 + $0x20c] sm:$0xf]
    %v294 = vld [vmem:[#allocation5 + $0x210] sm:$0xf]
    %v295 = vld [vmem:[#allocation5 + $0x214] sm:$0xf]
    %v296 = vld [vmem:[#allocation5 + $0x218] sm:$0xf]
    %v297 = vld [vmem:[#allocation5 + $0x21c] sm:$0xf]
    %v298 = vld [vmem:[#allocation5 + $0x220] sm:$0xf]
    %v299 = vld [vmem:[#allocation5 + $0x224] sm:$0xf]
    %v300 = vld [vmem:[#allocation5 + $0x228] sm:$0xf]
    %v301 = vld [vmem:[#allocation5 + $0x22c] sm:$0xf]
    %v302 = vld [vmem:[#allocation5 + $0x230] sm:$0xf]
    %v303 = vld [vmem:[#allocation5 + $0x234] sm:$0xf]
    %v304 = vld [vmem:[#allocation5 + $0x238] sm:$0xf]
    %v305 = vld [vmem:[#allocation5 + $0x23c] sm:$0xf]
    %v306 = vld [vmem:[#allocation5 + $0x240] sm:$0xf]
    %v307 = vld [vmem:[#allocation5 + $0x244] sm:$0xf]
    %v308 = vld [vmem:[#allocation5 + $0x248] sm:$0xf]
    %v309 = vld [vmem:[#allocation5 + $0x24c] sm:$0xf]
    %v310 = vld [vmem:[#allocation5 + $0x250] sm:$0xf]
    %v311 = vld [vmem:[#allocation5 + $0x254] sm:$0xf]
    %v312 = vld [vmem:[#allocation5 + $0x258] sm:$0xf]
    %v313 = vld [vmem:[#allocation5 + $0x25c] sm:$0xf]
    %v314 = vld [vmem:[#allocation5 + $0x260] sm:$0xf]
    %v315 = vld [vmem:[#allocation5 + $0x264] sm:$0xf]
    %v316 = vld [vmem:[#allocation5 + $0x268] sm:$0xf]
    %v317 = vld [vmem:[#allocation5 + $0x26c] sm:$0xf]
    %v318 = vld [vmem:[#allocation5 + $0x270] sm:$0xf]
    %v319 = vld [vmem:[#allocation5 + $0x274] sm:$0xf]
    %v320 = vld [vmem:[#allocation5 + $0x278] sm:$0xf]
    %v321 = vld [vmem:[#allocation5 + $0x27c] sm:$0xf]
    %v322 = vld [vmem:[#allocation5 + $0x280] sm:$0xf]
    %v323 = vld [vmem:[#allocation5 + $0x284] sm:$0xf]
    %v324 = vld [vmem:[#allocation5 + $0x288] sm:$0xf]
    %v325 = vld [vmem:[#allocation5 + $0x28c] sm:$0xf]
    %v326 = vld [vmem:[#allocation5 + $0x290] sm:$0xf]
    %v327 = vld [vmem:[#allocation5 + $0x294] sm:$0xf]
    %v328 = vld [vmem:[#allocation5 + $0x298] sm:$0xf]
    %v329 = vld [vmem:[#allocation5 + $0x29c] sm:$0xf]
    %v330 = vld [vmem:[#allocation5 + $0x2a0] sm:$0xf]
    %v331 = vld [vmem:[#allocation5 + $0x2a4] sm:$0xf]
    %v332 = vld [vmem:[#allocation5 + $0x2a8] sm:$0xf]
    %v333 = vld [vmem:[#allocation5 + $0x2ac] sm:$0xf]
    %v334 = vld [vmem:[#allocation5 + $0x2b0] sm:$0xf]
    %v335 = vld [vmem:[#allocation5 + $0x2b4] sm:$0xf]
    %v336 = vld [vmem:[#allocation5 + $0x2b8] sm:$0xf]
    %v337 = vld [vmem:[#allocation5 + $0x2bc] sm:$0xf]
    %v338 = vld [vmem:[#allocation5 + $0x2c0] sm:$0xf]
    %v339 = vld [vmem:[#allocation5 + $0x2c4] sm:$0xf]
    %v340 = vld [vmem:[#allocation5 + $0x2c8] sm:$0xf]
    %v341 = vld [vmem:[#allocation5 + $0x2cc] sm:$0xf]
    %v342 = vld [vmem:[#allocation5 + $0x2d0] sm:$0xf]
    %v343 = vld [vmem:[#allocation5 + $0x2d4] sm:$0xf]
    %v344 = vld [vmem:[#allocation5 + $0x2d8] sm:$0xf]
    %v345 = vld [vmem:[#allocation5 + $0x2dc] sm:$0xf]
    %v346 = vld [vmem:[#allocation5 + $0x2e0] sm:$0xf]
    %v347 = vld [vmem:[#allocation5 + $0x2e4] sm:$0xf]
    %v348 = vld [vmem:[#allocation5 + $0x2e8] sm:$0xf]
    %v349 = vld [vmem:[#allocation5 + $0x2ec] sm:$0xf]
    %v350 = vld [vmem:[#allocation5 + $0x2f0] sm:$0xf]
    %v351 = vld [vmem:[#allocation5 + $0x2f4] sm:$0xf]
    %v352 = vld [vmem:[#allocation5 + $0x2f8] sm:$0xf]
    %v353 = vld [vmem:[#allocation5 + $0x2fc] sm:$0xf]
    %v354 = vld [vmem:[#allocation5 + $0x300] sm:$0xf]
    %v355 = vld [vmem:[#allocation5 + $0x304] sm:$0xf]
    %v356 = vld [vmem:[#allocation5 + $0x308] sm:$0xf]
    %v357 = vld [vmem:[#allocation5 + $0x30c] sm:$0xf]
    %v358 = vld [vmem:[#allocation5 + $0x310] sm:$0xf]
    %v359 = vld [vmem:[#allocation5 + $0x314] sm:$0xf]
    %v360 = vld [vmem:[#allocation5 + $0x318] sm:$0xf]
    %v361 = vld [vmem:[#allocation5 + $0x31c] sm:$0xf]
    %v362 = vld [vmem:[#allocation5 + $0x320] sm:$0xf]
    %v363 = vld [vmem:[#allocation5 + $0x324] sm:$0xf]
    %v364 = vld [vmem:[#allocation5 + $0x328] sm:$0xf]
    %v365 = vld [vmem:[#allocation5 + $0x32c] sm:$0xf]
    %v366 = vld [vmem:[#allocation5 + $0x330] sm:$0xf]
    %v367 = vld [vmem:[#allocation5 + $0x334] sm:$0xf]
    %v368 = vld [vmem:[#allocation5 + $0x338] sm:$0xf]
    %v369 = vld [vmem:[#allocation5 + $0x33c] sm:$0xf]
    %v370 = vld [vmem:[#allocation5 + $0x340] sm:$0xf]
    %v371 = vld [vmem:[#allocation5 + $0x344] sm:$0xf]
    %v372 = vld [vmem:[#allocation5 + $0x348] sm:$0xf]
    %v373 = vld [vmem:[#allocation5 + $0x34c] sm:$0xf]
    %v374 = vld [vmem:[#allocation5 + $0x350] sm:$0xf]
    %v375 = vld [vmem:[#allocation5 + $0x354] sm:$0xf]
    %v376 = vld [vmem:[#allocation5 + $0x358] sm:$0xf]
    %v377 = vld [vmem:[#allocation5 + $0x35c] sm:$0xf]
    %v378 = vld [vmem:[#allocation5 + $0x360] sm:$0xf]
    %v379 = vld [vmem:[#allocation5 + $0x364] sm:$0xf]
    %v380 = vld [vmem:[#allocation5 + $0x368] sm:$0xf]
    %v381 = vld [vmem:[#allocation5 + $0x36c] sm:$0xf]
    %v382 = vld [vmem:[#allocation5 + $0x370] sm:$0xf]
    %v383 = vld [vmem:[#allocation5 + $0x374] sm:$0xf]
    %v384 = vld [vmem:[#allocation5 + $0x378] sm:$0xf]
    %v385 = vld [vmem:[#allocation5 + $0x37c] sm:$0xf]
    %v386 = vld [vmem:[#allocation5 + $0x380] sm:$0xf]
    %v387 = vld [vmem:[#allocation5 + $0x384] sm:$0xf]
    %v388 = vld [vmem:[#allocation5 + $0x388] sm:$0xf]
    %v389 = vld [vmem:[#allocation5 + $0x38c] sm:$0xf]
    %v390 = vld [vmem:[#allocation5 + $0x390] sm:$0xf]
    %v391 = vld [vmem:[#allocation5 + $0x394] sm:$0xf]
    %v392 = vld [vmem:[#allocation5 + $0x398] sm:$0xf]
    %v393 = vld [vmem:[#allocation5 + $0x39c] sm:$0xf]
    %v394 = vld [vmem:[#allocation5 + $0x3a0] sm:$0xf]
    %v395 = vld [vmem:[#allocation5 + $0x3a4] sm:$0xf]
    %v396 = vld [vmem:[#allocation5 + $0x3a8] sm:$0xf]
    %v397 = vld [vmem:[#allocation5 + $0x3ac] sm:$0xf]
    %v398 = vld [vmem:[#allocation5 + $0x3b0] sm:$0xf]
    %v399 = vld [vmem:[#allocation5 + $0x3b4] sm:$0xf]
    %v400 = vld [vmem:[#allocation5 + $0x3b8] sm:$0xf]
    %v401 = vld [vmem:[#allocation5 + $0x3bc] sm:$0xf]
    %v402 = vld [vmem:[#allocation5 + $0x3c0] sm:$0xf]
    %v403 = vld [vmem:[#allocation5 + $0x3c4] sm:$0xf]
    %v404 = vld [vmem:[#allocation5 + $0x3c8] sm:$0xf]
    %v405 = vld [vmem:[#allocation5 + $0x3cc] sm:$0xf]
    %v406 = vld [vmem:[#allocation5 + $0x3d0] sm:$0xf]
    %v407 = vld [vmem:[#allocation5 + $0x3d4] sm:$0xf]
    %v408 = vld [vmem:[#allocation5 + $0x3d8] sm:$0xf]
    %v409 = vld [vmem:[#allocation5 + $0x3dc] sm:$0xf]
    %v410 = vld [vmem:[#allocation5 + $0x3e0] sm:$0xf]
    %v411 = vld [vmem:[#allocation5 + $0x3e4] sm:$0xf]
    %v412 = vld [vmem:[#allocation5 + $0x3e8] sm:$0xf]
    %v413 = vld [vmem:[#allocation5 + $0x3ec] sm:$0xf]
    %v414 = vld [vmem:[#allocation5 + $0x3f0] sm:$0xf]
    %v415 = vld [vmem:[#allocation5 + $0x3f4] sm:$0xf]
    %v416 = vld [vmem:[#allocation5 + $0x3f8] sm:$0xf]
    %v417 = vld [vmem:[#allocation5 + $0x3fc] sm:$0xf]
    %v418 = vld [vmem:[#allocation5 + $0x400] sm:$0xf]
    %v419 = vld [vmem:[#allocation5 + $0x404] sm:$0xf]
    %v420 = vld [vmem:[#allocation5 + $0x408] sm:$0xf]
    %v421 = vld [vmem:[#allocation5 + $0x40c] sm:$0xf]
    %v422 = vld [vmem:[#allocation5 + $0x410] sm:$0xf]
    %v423 = vld [vmem:[#allocation5 + $0x414] sm:$0xf]
    %v424 = vld [vmem:[#allocation5 + $0x418] sm:$0xf]
    %v425 = vld [vmem:[#allocation5 + $0x41c] sm:$0xf]
    %v426 = vld [vmem:[#allocation5 + $0x420] sm:$0xf]
    %v427 = vld [vmem:[#allocation5 + $0x424] sm:$0xf]
    %v428 = vld [vmem:[#allocation5 + $0x428] sm:$0xf]
    %v429 = vld [vmem:[#allocation5 + $0x42c] sm:$0xf]
    %v430 = vld [vmem:[#allocation5 + $0x430] sm:$0xf]
    %v431 = vld [vmem:[#allocation5 + $0x434] sm:$0xf]
    %v432 = vld [vmem:[#allocation5 + $0x438] sm:$0xf]
    %v433 = vld [vmem:[#allocation5 + $0x43c] sm:$0xf]
    %v434 = vld [vmem:[#allocation5 + $0x440] sm:$0xf]
    %v435 = vld [vmem:[#allocation5 + $0x444] sm:$0xf]
    %v436 = vld [vmem:[#allocation5 + $0x448] sm:$0xf]
    %v437 = vld [vmem:[#allocation5 + $0x44c] sm:$0xf]
    %v438 = vld [vmem:[#allocation5 + $0x450] sm:$0xf]
    %v439 = vld [vmem:[#allocation5 + $0x454] sm:$0xf]
    %v440 = vld [vmem:[#allocation5 + $0x458] sm:$0xf]
    %v441 = vld [vmem:[#allocation5 + $0x45c] sm:$0xf]
    %v442 = vld [vmem:[#allocation5 + $0x460] sm:$0xf]
    %v443 = vld [vmem:[#allocation5 + $0x464] sm:$0xf]
    %v444 = vld [vmem:[#allocation5 + $0x468] sm:$0xf]
    %v445 = vld [vmem:[#allocation5 + $0x46c] sm:$0xf]
    %v446 = vld [vmem:[#allocation5 + $0x470] sm:$0xf]
    %v447 = vld [vmem:[#allocation5 + $0x474] sm:$0xf]
    %v448 = vld [vmem:[#allocation5 + $0x478] sm:$0xf]
    %v449 = vld [vmem:[#allocation5 + $0x47c] sm:$0xf]
    %v450 = vld [vmem:[#allocation5 + $0x480] sm:$0xf]
    %v451 = vld [vmem:[#allocation5 + $0x484] sm:$0xf]
    %v452 = vld [vmem:[#allocation5 + $0x488] sm:$0xf]
    %v453 = vld [vmem:[#allocation5 + $0x48c] sm:$0xf]
    %v454 = vld [vmem:[#allocation5 + $0x490] sm:$0xf]
    %v455 = vld [vmem:[#allocation5 + $0x494] sm:$0xf]
    %v456 = vld [vmem:[#allocation5 + $0x498] sm:$0xf]
    %v457 = vld [vmem:[#allocation5 + $0x49c] sm:$0xf]
    %v458 = vld [vmem:[#allocation5 + $0x4a0] sm:$0xf]
    %v459 = vld [vmem:[#allocation5 + $0x4a4] sm:$0xf]
    %v460 = vld [vmem:[#allocation5 + $0x4a8] sm:$0xf]
    %v461 = vld [vmem:[#allocation5 + $0x4ac] sm:$0xf]
    %v462 = vld [vmem:[#allocation5 + $0x4b0] sm:$0xf]
    %v463 = vld [vmem:[#allocation5 + $0x4b4] sm:$0xf]
    %v464 = vld [vmem:[#allocation5 + $0x4b8] sm:$0xf]
    %v465 = vld [vmem:[#allocation5 + $0x4bc] sm:$0xf]
    %v466 = vld [vmem:[#allocation5 + $0x4c0] sm:$0xf]
    %v467 = vld [vmem:[#allocation5 + $0x4c4] sm:$0xf]
    %v468 = vld [vmem:[#allocation5 + $0x4c8] sm:$0xf]
    %v469 = vld [vmem:[#allocation5 + $0x4cc] sm:$0xf]
    %v470 = vld [vmem:[#allocation5 + $0x4d0] sm:$0xf]
    %v471 = vld [vmem:[#allocation5 + $0x4d4] sm:$0xf]
    %v472 = vld [vmem:[#allocation5 + $0x4d8] sm:$0xf]
    %v473 = vld [vmem:[#allocation5 + $0x4dc] sm:$0xf]
    %v474 = vld [vmem:[#allocation5 + $0x4e0] sm:$0xf]
    %v475 = vld [vmem:[#allocation5 + $0x4e4] sm:$0xf]
    %v476 = vld [vmem:[#allocation5 + $0x4e8] sm:$0xf]
    %v477 = vld [vmem:[#allocation5 + $0x4ec] sm:$0xf]
    %v478 = vld [vmem:[#allocation5 + $0x4f0] sm:$0xf]
    %v479 = vld [vmem:[#allocation5 + $0x4f4] sm:$0xf]
    %v480 = vld [vmem:[#allocation5 + $0x4f8] sm:$0xf]
    %v481 = vld [vmem:[#allocation5 + $0x4fc] sm:$0xf]
    %v482 = vld [vmem:[#allocation5 + $0x500] sm:$0xf]
    %v483 = vld [vmem:[#allocation5 + $0x504] sm:$0xf]
    %v484 = vld [vmem:[#allocation5 + $0x508] sm:$0xf]
    %v485 = vld [vmem:[#allocation5 + $0x50c] sm:$0xf]
    %v486 = vld [vmem:[#allocation5 + $0x510] sm:$0xf]
    %v487 = vld [vmem:[#allocation5 + $0x514] sm:$0xf]
    %v488 = vld [vmem:[#allocation5 + $0x518] sm:$0xf]
    %v489 = vld [vmem:[#allocation5 + $0x51c] sm:$0xf]
    %v490 = vld [vmem:[#allocation5 + $0x520] sm:$0xf]
    %v491 = vld [vmem:[#allocation5 + $0x524] sm:$0xf]
    %v492 = vld [vmem:[#allocation5 + $0x528] sm:$0xf]
    %v493 = vld [vmem:[#allocation5 + $0x52c] sm:$0xf]
    %v494 = vld [vmem:[#allocation5 + $0x530] sm:$0xf]
    %v495 = vld [vmem:[#allocation5 + $0x534] sm:$0xf]
    %v496 = vld [vmem:[#allocation5 + $0x538] sm:$0xf]
    %v497 = vld [vmem:[#allocation5 + $0x53c] sm:$0xf]
    %v498 = vld [vmem:[#allocation5 + $0x540] sm:$0xf]
    %v499 = vld [vmem:[#allocation5 + $0x544] sm:$0xf]
    %v500 = vld [vmem:[#allocation5 + $0x548] sm:$0xf]
    %v501 = vld [vmem:[#allocation5 + $0x54c] sm:$0xf]
    %v502 = vld [vmem:[#allocation5 + $0x550] sm:$0xf]
    %v503 = vld [vmem:[#allocation5 + $0x554] sm:$0xf]
    %v504 = vld [vmem:[#allocation5 + $0x558] sm:$0xf]
    %v505 = vld [vmem:[#allocation5 + $0x55c] sm:$0xf]
    %v506 = vld [vmem:[#allocation5 + $0x560] sm:$0xf]
    %v507 = vld [vmem:[#allocation5 + $0x564] sm:$0xf]
    %v508 = vld [vmem:[#allocation5 + $0x568] sm:$0xf]
    %v509 = vld [vmem:[#allocation5 + $0x56c] sm:$0xf]
    %v510 = vld [vmem:[#allocation5 + $0x570] sm:$0xf]
    %v511 = vld [vmem:[#allocation5 + $0x574] sm:$0xf]
    %v512 = vld [vmem:[#allocation5 + $0x578] sm:$0xf]
    %v513 = vld [vmem:[#allocation5 + $0x57c] sm:$0xf]
    %v514 = vld [vmem:[#allocation5 + $0x580] sm:$0xf]
    %v515 = vld [vmem:[#allocation5 + $0x584] sm:$0xf]
    %v516 = vld [vmem:[#allocation5 + $0x588] sm:$0xf]
    %v517 = vld [vmem:[#allocation5 + $0x58c] sm:$0xf]
    %v518 = vld [vmem:[#allocation5 + $0x590] sm:$0xf]
    %v519 = vld [vmem:[#allocation5 + $0x594] sm:$0xf]
    %v520 = vld [vmem:[#allocation5 + $0x598] sm:$0xf]
    %v521 = vld [vmem:[#allocation5 + $0x59c] sm:$0xf]
    %v522 = vld [vmem:[#allocation5 + $0x5a0] sm:$0xf]
    %v523 = vld [vmem:[#allocation5 + $0x5a4] sm:$0xf]
    %v524 = vld [vmem:[#allocation5 + $0x5a8] sm:$0xf]
    %v525 = vld [vmem:[#allocation5 + $0x5ac] sm:$0xf]
    %v526 = vld [vmem:[#allocation5 + $0x5b0] sm:$0xf]
    %v527 = vld [vmem:[#allocation5 + $0x5b4] sm:$0xf]
    %v528 = vld [vmem:[#allocation5 + $0x5b8] sm:$0xf]
    %v529 = vld [vmem:[#allocation5 + $0x5bc] sm:$0xf]
    %v530 = vld [vmem:[#allocation5 + $0x5c0] sm:$0xf]
    %v531 = vld [vmem:[#allocation5 + $0x5c4] sm:$0xf]
    %v532 = vld [vmem:[#allocation5 + $0x5c8] sm:$0xf]
    %v533 = vld [vmem:[#allocation5 + $0x5cc] sm:$0xf]
    %v534 = vld [vmem:[#allocation5 + $0x5d0] sm:$0xf]
    %v535 = vld [vmem:[#allocation5 + $0x5d4] sm:$0xf]
    %v536 = vld [vmem:[#allocation5 + $0x5d8] sm:$0xf]
    %v537 = vld [vmem:[#allocation5 + $0x5dc] sm:$0xf]
    %v538 = vld [vmem:[#allocation5 + $0x5e0] sm:$0xf]
    %v539 = vld [vmem:[#allocation5 + $0x5e4] sm:$0xf]
    %v540 = vld [vmem:[#allocation5 + $0x5e8] sm:$0xf]
    %v541 = vld [vmem:[#allocation5 + $0x5ec] sm:$0xf]
    %v542 = vld [vmem:[#allocation5 + $0x5f0] sm:$0xf]
    %v543 = vld [vmem:[#allocation5 + $0x5f4] sm:$0xf]
    %v544 = vld [vmem:[#allocation5 + $0x5f8] sm:$0xf]
    %v545 = vld [vmem:[#allocation5 + $0x5fc] sm:$0xf]
    %v546 = vld [vmem:[%s2] sm:$0x1]
    %v548 = vperm.slane %v546, 0
    %v934 = vunpack.c.l.b16 %v162
    %v935 = vunpack.c.l.b16 %v163
    %v936 = vunpack.c.l.b16 %v164
    %v937 = vunpack.c.l.b16 %v165
    %v938 = vunpack.c.l.b16 %v166
    %v939 = vunpack.c.l.b16 %v167
    %v940 = vunpack.c.l.b16 %v168
    %v941 = vunpack.c.l.b16 %v169
    %v942 = vunpack.c.l.b16 %v170
    %v943 = vunpack.c.l.b16 %v171
    %v944 = vunpack.c.l.b16 %v172
    %v945 = vunpack.c.l.b16 %v173
    %v946 = vunpack.c.l.b16 %v174
    %v947 = vunpack.c.l.b16 %v175
    %v948 = vunpack.c.l.b16 %v176
    %v949 = vunpack.c.l.b16 %v177
    %v950 = vunpack.c.l.b16 %v178
    %v951 = vunpack.c.l.b16 %v179
    %v952 = vunpack.c.l.b16 %v180
    %v953 = vunpack.c.l.b16 %v181
    %v954 = vunpack.c.l.b16 %v182
    %v955 = vunpack.c.l.b16 %v183
    %v956 = vunpack.c.l.b16 %v184
    %v957 = vunpack.c.l.b16 %v185
    %v958 = vunpack.c.l.b16 %v186
    %v959 = vunpack.c.l.b16 %v187
    %v960 = vunpack.c.l.b16 %v188
    %v961 = vunpack.c.l.b16 %v189
    %v962 = vunpack.c.l.b16 %v190
    %v963 = vunpack.c.l.b16 %v191
    %v964 = vunpack.c.l.b16 %v192
    %v965 = vunpack.c.l.b16 %v193
    %v966 = vunpack.c.l.b16 %v194
    %v967 = vunpack.c.l.b16 %v195
    %v968 = vunpack.c.l.b16 %v196
    %v969 = vunpack.c.l.b16 %v197
    %v970 = vunpack.c.l.b16 %v198
    %v971 = vunpack.c.l.b16 %v199
    %v972 = vunpack.c.l.b16 %v200
    %v973 = vunpack.c.l.b16 %v201
    %v974 = vunpack.c.l.b16 %v202
    %v975 = vunpack.c.l.b16 %v203
    %v976 = vunpack.c.l.b16 %v204
    %v977 = vunpack.c.l.b16 %v205
    %v978 = vunpack.c.l.b16 %v206
    %v979 = vunpack.c.l.b16 %v207
    %v980 = vunpack.c.l.b16 %v208
    %v981 = vunpack.c.l.b16 %v209
    %v982 = vunpack.c.l.b16 %v210
    %v983 = vunpack.c.l.b16 %v211
    %v984 = vunpack.c.l.b16 %v212
    %v985 = vunpack.c.l.b16 %v213
    %v986 = vunpack.c.l.b16 %v214
    %v987 = vunpack.c.l.b16 %v215
    %v988 = vunpack.c.l.b16 %v216
    %v989 = vunpack.c.l.b16 %v217
    %v990 = vunpack.c.l.b16 %v218
    %v991 = vunpack.c.l.b16 %v219
    %v992 = vunpack.c.l.b16 %v220
    %v993 = vunpack.c.l.b16 %v221
    %v994 = vunpack.c.l.b16 %v222
    %v995 = vunpack.c.l.b16 %v223
    %v996 = vunpack.c.l.b16 %v224
    %v997 = vunpack.c.l.b16 %v225
    %v998 = vunpack.c.l.b16 %v226
    %v999 = vunpack.c.l.b16 %v227
    %v1000 = vunpack.c.l.b16 %v228
    %v1001 = vunpack.c.l.b16 %v229
    %v1002 = vunpack.c.l.b16 %v230
    %v1003 = vunpack.c.l.b16 %v231
    %v1004 = vunpack.c.l.b16 %v232
    %v1005 = vunpack.c.l.b16 %v233
    %v1006 = vunpack.c.l.b16 %v234
    %v1007 = vunpack.c.l.b16 %v235
    %v1008 = vunpack.c.l.b16 %v236
    %v1009 = vunpack.c.l.b16 %v237
    %v1010 = vunpack.c.l.b16 %v238
    %v1011 = vunpack.c.l.b16 %v239
    %v1012 = vunpack.c.l.b16 %v240
    %v1013 = vunpack.c.l.b16 %v241
    %v1014 = vunpack.c.l.b16 %v242
    %v1015 = vunpack.c.l.b16 %v243
    %v1016 = vunpack.c.l.b16 %v244
    %v1017 = vunpack.c.l.b16 %v245
    %v1018 = vunpack.c.l.b16 %v246
    %v1019 = vunpack.c.l.b16 %v247
    %v1020 = vunpack.c.l.b16 %v248
    %v1021 = vunpack.c.l.b16 %v249
    %v1022 = vunpack.c.l.b16 %v250
    %v1023 = vunpack.c.l.b16 %v251
    %v1024 = vunpack.c.l.b16 %v252
    %v1025 = vunpack.c.l.b16 %v253
    %v1026 = vunpack.c.l.b16 %v254
    %v1027 = vunpack.c.l.b16 %v255
    %v1028 = vunpack.c.l.b16 %v256
    %v1029 = vunpack.c.l.b16 %v257
    %v1030 = vunpack.c.l.b16 %v258
    %v1031 = vunpack.c.l.b16 %v259
    %v1032 = vunpack.c.l.b16 %v260
    %v1033 = vunpack.c.l.b16 %v261
    %v1034 = vunpack.c.l.b16 %v262
    %v1035 = vunpack.c.l.b16 %v263
    %v1036 = vunpack.c.l.b16 %v264
    %v1037 = vunpack.c.l.b16 %v265
    %v1038 = vunpack.c.l.b16 %v266
    %v1039 = vunpack.c.l.b16 %v267
    %v1040 = vunpack.c.l.b16 %v268
    %v1041 = vunpack.c.l.b16 %v269
    %v1042 = vunpack.c.l.b16 %v270
    %v1043 = vunpack.c.l.b16 %v271
    %v1044 = vunpack.c.l.b16 %v272
    %v1045 = vunpack.c.l.b16 %v273
    %v1046 = vunpack.c.l.b16 %v274
    %v1047 = vunpack.c.l.b16 %v275
    %v1048 = vunpack.c.l.b16 %v276
    %v1049 = vunpack.c.l.b16 %v277
    %v1050 = vunpack.c.l.b16 %v278
    %v1051 = vunpack.c.l.b16 %v279
    %v1052 = vunpack.c.l.b16 %v280
    %v1053 = vunpack.c.l.b16 %v281
    %v1054 = vunpack.c.l.b16 %v282
    %v1055 = vunpack.c.l.b16 %v283
    %v1056 = vunpack.c.l.b16 %v284
    %v1057 = vunpack.c.l.b16 %v285
    %v1058 = vunpack.c.l.b16 %v286
    %v1059 = vunpack.c.l.b16 %v287
    %v1060 = vunpack.c.l.b16 %v288
    %v1061 = vunpack.c.l.b16 %v289
    %v1062 = vunpack.c.l.b16 %v290
    %v1063 = vunpack.c.l.b16 %v291
    %v1064 = vunpack.c.l.b16 %v292
    %v1065 = vunpack.c.l.b16 %v293
    %v1066 = vunpack.c.l.b16 %v294
    %v1067 = vunpack.c.l.b16 %v295
    %v1068 = vunpack.c.l.b16 %v296
    %v1069 = vunpack.c.l.b16 %v297
    %v1070 = vunpack.c.l.b16 %v298
    %v1071 = vunpack.c.l.b16 %v299
    %v1072 = vunpack.c.l.b16 %v300
    %v1073 = vunpack.c.l.b16 %v301
    %v1074 = vunpack.c.l.b16 %v302
    %v1075 = vunpack.c.l.b16 %v303
    %v1076 = vunpack.c.l.b16 %v304
    %v1077 = vunpack.c.l.b16 %v305
    %v1078 = vunpack.c.l.b16 %v306
    %v1079 = vunpack.c.l.b16 %v307
    %v1080 = vunpack.c.l.b16 %v308
    %v1081 = vunpack.c.l.b16 %v309
    %v1082 = vunpack.c.l.b16 %v310
    %v1083 = vunpack.c.l.b16 %v311
    %v1084 = vunpack.c.l.b16 %v312
    %v1085 = vunpack.c.l.b16 %v313
    %v1086 = vunpack.c.l.b16 %v314
    %v1087 = vunpack.c.l.b16 %v315
    %v1088 = vunpack.c.l.b16 %v316
    %v1089 = vunpack.c.l.b16 %v317
    %v1090 = vunpack.c.l.b16 %v318
    %v1091 = vunpack.c.l.b16 %v319
    %v1092 = vunpack.c.l.b16 %v320
    %v1093 = vunpack.c.l.b16 %v321
    %v1094 = vunpack.c.l.b16 %v322
    %v1095 = vunpack.c.l.b16 %v323
    %v1096 = vunpack.c.l.b16 %v324
    %v1097 = vunpack.c.l.b16 %v325
    %v1098 = vunpack.c.l.b16 %v326
    %v1099 = vunpack.c.l.b16 %v327
    %v1100 = vunpack.c.l.b16 %v328
    %v1101 = vunpack.c.l.b16 %v329
    %v1102 = vunpack.c.l.b16 %v330
    %v1103 = vunpack.c.l.b16 %v331
    %v1104 = vunpack.c.l.b16 %v332
    %v1105 = vunpack.c.l.b16 %v333
    %v1106 = vunpack.c.l.b16 %v334
    %v1107 = vunpack.c.l.b16 %v335
    %v1108 = vunpack.c.l.b16 %v336
    %v1109 = vunpack.c.l.b16 %v337
    %v1110 = vunpack.c.l.b16 %v338
    %v1111 = vunpack.c.l.b16 %v339
    %v1112 = vunpack.c.l.b16 %v340
    %v1113 = vunpack.c.l.b16 %v341
    %v1114 = vunpack.c.l.b16 %v342
    %v1115 = vunpack.c.l.b16 %v343
    %v1116 = vunpack.c.l.b16 %v344
    %v1117 = vunpack.c.l.b16 %v345
    %v1118 = vunpack.c.l.b16 %v346
    %v1119 = vunpack.c.l.b16 %v347
    %v1120 = vunpack.c.l.b16 %v348
    %v1121 = vunpack.c.l.b16 %v349
    %v1122 = vunpack.c.l.b16 %v350
    %v1123 = vunpack.c.l.b16 %v351
    %v1124 = vunpack.c.l.b16 %v352
    %v1125 = vunpack.c.l.b16 %v353
    %v1126 = vunpack.c.l.b16 %v354
    %v1127 = vunpack.c.l.b16 %v355
    %v1128 = vunpack.c.l.b16 %v356
    %v1129 = vunpack.c.l.b16 %v357
    %v1130 = vunpack.c.l.b16 %v358
    %v1131 = vunpack.c.l.b16 %v359
    %v1132 = vunpack.c.l.b16 %v360
    %v1133 = vunpack.c.l.b16 %v361
    %v1134 = vunpack.c.l.b16 %v362
    %v1135 = vunpack.c.l.b16 %v363
    %v1136 = vunpack.c.l.b16 %v364
    %v1137 = vunpack.c.l.b16 %v365
    %v1138 = vunpack.c.l.b16 %v366
    %v1139 = vunpack.c.l.b16 %v367
    %v1140 = vunpack.c.l.b16 %v368
    %v1141 = vunpack.c.l.b16 %v369
    %v1142 = vunpack.c.l.b16 %v370
    %v1143 = vunpack.c.l.b16 %v371
    %v1144 = vunpack.c.l.b16 %v372
    %v1145 = vunpack.c.l.b16 %v373
    %v1146 = vunpack.c.l.b16 %v374
    %v1147 = vunpack.c.l.b16 %v375
    %v1148 = vunpack.c.l.b16 %v376
    %v1149 = vunpack.c.l.b16 %v377
    %v1150 = vunpack.c.l.b16 %v378
    %v1151 = vunpack.c.l.b16 %v379
    %v1152 = vunpack.c.l.b16 %v380
    %v1153 = vunpack.c.l.b16 %v381
    %v1154 = vunpack.c.l.b16 %v382
    %v1155 = vunpack.c.l.b16 %v383
    %v1156 = vunpack.c.l.b16 %v384
    %v1157 = vunpack.c.l.b16 %v385
    %v1158 = vunpack.c.l.b16 %v386
    %v1159 = vunpack.c.l.b16 %v387
    %v1160 = vunpack.c.l.b16 %v388
    %v1161 = vunpack.c.l.b16 %v389
    %v1162 = vunpack.c.l.b16 %v390
    %v1163 = vunpack.c.l.b16 %v391
    %v1164 = vunpack.c.l.b16 %v392
    %v1165 = vunpack.c.l.b16 %v393
    %v1166 = vunpack.c.l.b16 %v394
    %v1167 = vunpack.c.l.b16 %v395
    %v1168 = vunpack.c.l.b16 %v396
    %v1169 = vunpack.c.l.b16 %v397
    %v1170 = vunpack.c.l.b16 %v398
    %v1171 = vunpack.c.l.b16 %v399
    %v1172 = vunpack.c.l.b16 %v400
    %v1173 = vunpack.c.l.b16 %v401
    %v1174 = vunpack.c.l.b16 %v402
    %v1175 = vunpack.c.l.b16 %v403
    %v1176 = vunpack.c.l.b16 %v404
    %v1177 = vunpack.c.l.b16 %v405
    %v1178 = vunpack.c.l.b16 %v406
    %v1179 = vunpack.c.l.b16 %v407
    %v1180 = vunpack.c.l.b16 %v408
    %v1181 = vunpack.c.l.b16 %v409
    %v1182 = vunpack.c.l.b16 %v410
    %v1183 = vunpack.c.l.b16 %v411
    %v1184 = vunpack.c.l.b16 %v412
    %v1185 = vunpack.c.l.b16 %v413
    %v1186 = vunpack.c.l.b16 %v414
    %v1187 = vunpack.c.l.b16 %v415
    %v1188 = vunpack.c.l.b16 %v416
    %v1189 = vunpack.c.l.b16 %v417
    %v1190 = vunpack.c.l.b16 %v418
    %v1191 = vunpack.c.l.b16 %v419
    %v1192 = vunpack.c.l.b16 %v420
    %v1193 = vunpack.c.l.b16 %v421
    %v1194 = vunpack.c.l.b16 %v422
    %v1195 = vunpack.c.l.b16 %v423
    %v1196 = vunpack.c.l.b16 %v424
    %v1197 = vunpack.c.l.b16 %v425
    %v1198 = vunpack.c.l.b16 %v426
    %v1199 = vunpack.c.l.b16 %v427
    %v1200 = vunpack.c.l.b16 %v428
    %v1201 = vunpack.c.l.b16 %v429
    %v1202 = vunpack.c.l.b16 %v430
    %v1203 = vunpack.c.l.b16 %v431
    %v1204 = vunpack.c.l.b16 %v432
    %v1205 = vunpack.c.l.b16 %v433
    %v1206 = vunpack.c.l.b16 %v434
    %v1207 = vunpack.c.l.b16 %v435
    %v1208 = vunpack.c.l.b16 %v436
    %v1209 = vunpack.c.l.b16 %v437
    %v1210 = vunpack.c.l.b16 %v438
    %v1211 = vunpack.c.l.b16 %v439
    %v1212 = vunpack.c.l.b16 %v440
    %v1213 = vunpack.c.l.b16 %v441
    %v1214 = vunpack.c.l.b16 %v442
    %v1215 = vunpack.c.l.b16 %v443
    %v1216 = vunpack.c.l.b16 %v444
    %v1217 = vunpack.c.l.b16 %v445
    %v1218 = vunpack.c.l.b16 %v446
    %v1219 = vunpack.c.l.b16 %v447
    %v1220 = vunpack.c.l.b16 %v448
    %v1221 = vunpack.c.l.b16 %v449
    %v1222 = vunpack.c.l.b16 %v450
    %v1223 = vunpack.c.l.b16 %v451
    %v1224 = vunpack.c.l.b16 %v452
    %v1225 = vunpack.c.l.b16 %v453
    %v1226 = vunpack.c.l.b16 %v454
    %v1227 = vunpack.c.l.b16 %v455
    %v1228 = vunpack.c.l.b16 %v456
    %v1229 = vunpack.c.l.b16 %v457
    %v1230 = vunpack.c.l.b16 %v458
    %v1231 = vunpack.c.l.b16 %v459
    %v1232 = vunpack.c.l.b16 %v460
    %v1233 = vunpack.c.l.b16 %v461
    %v1234 = vunpack.c.l.b16 %v462
    %v1235 = vunpack.c.l.b16 %v463
    %v1236 = vunpack.c.l.b16 %v464
    %v1237 = vunpack.c.l.b16 %v465
    %v1238 = vunpack.c.l.b16 %v466
    %v1239 = vunpack.c.l.b16 %v467
    %v1240 = vunpack.c.l.b16 %v468
    %v1241 = vunpack.c.l.b16 %v469
    %v1242 = vunpack.c.l.b16 %v470
    %v1243 = vunpack.c.l.b16 %v471
    %v1244 = vunpack.c.l.b16 %v472
    %v1245 = vunpack.c.l.b16 %v473
    %v1246 = vunpack.c.l.b16 %v474
    %v1247 = vunpack.c.l.b16 %v475
    %v1248 = vunpack.c.l.b16 %v476
    %v1249 = vunpack.c.l.b16 %v477
    %v1250 = vunpack.c.l.b16 %v478
    %v1251 = vunpack.c.l.b16 %v479
    %v1252 = vunpack.c.l.b16 %v480
    %v1253 = vunpack.c.l.b16 %v481
    %v1254 = vunpack.c.l.b16 %v482
    %v1255 = vunpack.c.l.b16 %v483
    %v1256 = vunpack.c.l.b16 %v484
    %v1257 = vunpack.c.l.b16 %v485
    %v1258 = vunpack.c.l.b16 %v486
    %v1259 = vunpack.c.l.b16 %v487
    %v1260 = vunpack.c.l.b16 %v488
    %v1261 = vunpack.c.l.b16 %v489
    %v1262 = vunpack.c.l.b16 %v490
    %v1263 = vunpack.c.l.b16 %v491
    %v1264 = vunpack.c.l.b16 %v492
    %v1265 = vunpack.c.l.b16 %v493
    %v1266 = vunpack.c.l.b16 %v494
    %v1267 = vunpack.c.l.b16 %v495
    %v1268 = vunpack.c.l.b16 %v496
    %v1269 = vunpack.c.l.b16 %v497
    %v1270 = vunpack.c.l.b16 %v498
    %v1271 = vunpack.c.l.b16 %v499
    %v1272 = vunpack.c.l.b16 %v500
    %v1273 = vunpack.c.l.b16 %v501
    %v1274 = vunpack.c.l.b16 %v502
    %v1275 = vunpack.c.l.b16 %v503
    %v1276 = vunpack.c.l.b16 %v504
    %v1277 = vunpack.c.l.b16 %v505
    %v1278 = vunpack.c.l.b16 %v506
    %v1279 = vunpack.c.l.b16 %v507
    %v1280 = vunpack.c.l.b16 %v508
    %v1281 = vunpack.c.l.b16 %v509
    %v1282 = vunpack.c.l.b16 %v510
    %v1283 = vunpack.c.l.b16 %v511
    %v1284 = vunpack.c.l.b16 %v512
    %v1285 = vunpack.c.l.b16 %v513
    %v1286 = vunpack.c.l.b16 %v514
    %v1287 = vunpack.c.l.b16 %v515
    %v1288 = vunpack.c.l.b16 %v516
    %v1289 = vunpack.c.l.b16 %v517
    %v1290 = vunpack.c.l.b16 %v518
    %v1291 = vunpack.c.l.b16 %v519
    %v1292 = vunpack.c.l.b16 %v520
    %v1293 = vunpack.c.l.b16 %v521
    %v1294 = vunpack.c.l.b16 %v522
    %v1295 = vunpack.c.l.b16 %v523
    %v1296 = vunpack.c.l.b16 %v524
    %v1297 = vunpack.c.l.b16 %v525
    %v1298 = vunpack.c.l.b16 %v526
    %v1299 = vunpack.c.l.b16 %v527
    %v1300 = vunpack.c.l.b16 %v528
    %v1301 = vunpack.c.l.b16 %v529
    %v1302 = vunpack.c.l.b16 %v530
    %v1303 = vunpack.c.l.b16 %v531
    %v1304 = vunpack.c.l.b16 %v532
    %v1305 = vunpack.c.l.b16 %v533
    %v1306 = vunpack.c.l.b16 %v534
    %v1307 = vunpack.c.l.b16 %v535
    %v1308 = vunpack.c.l.b16 %v536
    %v1309 = vunpack.c.l.b16 %v537
    %v1310 = vunpack.c.l.b16 %v538
    %v1311 = vunpack.c.l.b16 %v539
    %v1312 = vunpack.c.l.b16 %v540
    %v1313 = vunpack.c.l.b16 %v541
    %v1314 = vunpack.c.l.b16 %v542
    %v1315 = vunpack.c.l.b16 %v543
    %v1316 = vunpack.c.l.b16 %v544
    %v1317 = vunpack.c.l.b16 %v545
    %v1318 = vpack.c.b16 %v935, %v934
    %v1319 = vpack.c.b16 %v937, %v936
    %v1320 = vpack.c.b16 %v939, %v938
    %v1321 = vpack.c.b16 %v941, %v940
    %v1322 = vpack.c.b16 %v943, %v942
    %v1323 = vpack.c.b16 %v945, %v944
    %v1324 = vpack.c.b16 %v947, %v946
    %v1325 = vpack.c.b16 %v949, %v948
    %v1326 = vpack.c.b16 %v951, %v950
    %v1327 = vpack.c.b16 %v953, %v952
    %v1328 = vpack.c.b16 %v955, %v954
    %v1329 = vpack.c.b16 %v957, %v956
    %v1330 = vpack.c.b16 %v959, %v958
    %v1331 = vpack.c.b16 %v961, %v960
    %v1332 = vpack.c.b16 %v963, %v962
    %v1333 = vpack.c.b16 %v965, %v964
    %v1334 = vpack.c.b16 %v967, %v966
    %v1335 = vpack.c.b16 %v969, %v968
    %v1336 = vpack.c.b16 %v971, %v970
    %v1337 = vpack.c.b16 %v973, %v972
    %v1338 = vpack.c.b16 %v975, %v974
    %v1339 = vpack.c.b16 %v977, %v976
    %v1340 = vpack.c.b16 %v979, %v978
    %v1341 = vpack.c.b16 %v981, %v980
    %v1342 = vpack.c.b16 %v983, %v982
    %v1343 = vpack.c.b16 %v985, %v984
    %v1344 = vpack.c.b16 %v987, %v986
    %v1345 = vpack.c.b16 %v989, %v988
    %v1346 = vpack.c.b16 %v991, %v990
    %v1347 = vpack.c.b16 %v993, %v992
    %v1348 = vpack.c.b16 %v995, %v994
    %v1349 = vpack.c.b16 %v997, %v996
    %v1350 = vpack.c.b16 %v999, %v998
    %v1351 = vpack.c.b16 %v1001, %v1000
    %v1352 = vpack.c.b16 %v1003, %v1002
    %v1353 = vpack.c.b16 %v1005, %v1004
    %v1354 = vpack.c.b16 %v1007, %v1006
    %v1355 = vpack.c.b16 %v1009, %v1008
    %v1356 = vpack.c.b16 %v1011, %v1010
    %v1357 = vpack.c.b16 %v1013, %v1012
    %v1358 = vpack.c.b16 %v1015, %v1014
    %v1359 = vpack.c.b16 %v1017, %v1016
    %v1360 = vpack.c.b16 %v1019, %v1018
    %v1361 = vpack.c.b16 %v1021, %v1020
    %v1362 = vpack.c.b16 %v1023, %v1022
    %v1363 = vpack.c.b16 %v1025, %v1024
    %v1364 = vpack.c.b16 %v1027, %v1026
    %v1365 = vpack.c.b16 %v1029, %v1028
    %v1366 = vpack.c.b16 %v1031, %v1030
    %v1367 = vpack.c.b16 %v1033, %v1032
    %v1368 = vpack.c.b16 %v1035, %v1034
    %v1369 = vpack.c.b16 %v1037, %v1036
    %v1370 = vpack.c.b16 %v1039, %v1038
    %v1371 = vpack.c.b16 %v1041, %v1040
    %v1372 = vpack.c.b16 %v1043, %v1042
    %v1373 = vpack.c.b16 %v1045, %v1044
    %v1374 = vpack.c.b16 %v1047, %v1046
    %v1375 = vpack.c.b16 %v1049, %v1048
    %v1376 = vpack.c.b16 %v1051, %v1050
    %v1377 = vpack.c.b16 %v1053, %v1052
    %v1378 = vpack.c.b16 %v1055, %v1054
    %v1379 = vpack.c.b16 %v1057, %v1056
    %v1380 = vpack.c.b16 %v1059, %v1058
    %v1381 = vpack.c.b16 %v1061, %v1060
    %v1382 = vpack.c.b16 %v1063, %v1062
    %v1383 = vpack.c.b16 %v1065, %v1064
    %v1384 = vpack.c.b16 %v1067, %v1066
    %v1385 = vpack.c.b16 %v1069, %v1068
    %v1386 = vpack.c.b16 %v1071, %v1070
    %v1387 = vpack.c.b16 %v1073, %v1072
    %v1388 = vpack.c.b16 %v1075, %v1074
    %v1389 = vpack.c.b16 %v1077, %v1076
    %v1390 = vpack.c.b16 %v1079, %v1078
    %v1391 = vpack.c.b16 %v1081, %v1080
    %v1392 = vpack.c.b16 %v1083, %v1082
    %v1393 = vpack.c.b16 %v1085, %v1084
    %v1394 = vpack.c.b16 %v1087, %v1086
    %v1395 = vpack.c.b16 %v1089, %v1088
    %v1396 = vpack.c.b16 %v1091, %v1090
    %v1397 = vpack.c.b16 %v1093, %v1092
    %v1398 = vpack.c.b16 %v1095, %v1094
    %v1399 = vpack.c.b16 %v1097, %v1096
    %v1400 = vpack.c.b16 %v1099, %v1098
    %v1401 = vpack.c.b16 %v1101, %v1100
    %v1402 = vpack.c.b16 %v1103, %v1102
    %v1403 = vpack.c.b16 %v1105, %v1104
    %v1404 = vpack.c.b16 %v1107, %v1106
    %v1405 = vpack.c.b16 %v1109, %v1108
    %v1406 = vpack.c.b16 %v1111, %v1110
    %v1407 = vpack.c.b16 %v1113, %v1112
    %v1408 = vpack.c.b16 %v1115, %v1114
    %v1409 = vpack.c.b16 %v1117, %v1116
    %v1410 = vpack.c.b16 %v1119, %v1118
    %v1411 = vpack.c.b16 %v1121, %v1120
    %v1412 = vpack.c.b16 %v1123, %v1122
    %v1413 = vpack.c.b16 %v1125, %v1124
    %v1414 = vpack.c.b16 %v1127, %v1126
    %v1415 = vpack.c.b16 %v1129, %v1128
    %v1416 = vpack.c.b16 %v1131, %v1130
    %v1417 = vpack.c.b16 %v1133, %v1132
    %v1418 = vpack.c.b16 %v1135, %v1134
    %v1419 = vpack.c.b16 %v1137, %v1136
    %v1420 = vpack.c.b16 %v1139, %v1138
    %v1421 = vpack.c.b16 %v1141, %v1140
    %v1422 = vpack.c.b16 %v1143, %v1142
    %v1423 = vpack.c.b16 %v1145, %v1144
    %v1424 = vpack.c.b16 %v1147, %v1146
    %v1425 = vpack.c.b16 %v1149, %v1148
    %v1426 = vpack.c.b16 %v1151, %v1150
    %v1427 = vpack.c.b16 %v1153, %v1152
    %v1428 = vpack.c.b16 %v1155, %v1154
    %v1429 = vpack.c.b16 %v1157, %v1156
    %v1430 = vpack.c.b16 %v1159, %v1158
    %v1431 = vpack.c.b16 %v1161, %v1160
    %v1432 = vpack.c.b16 %v1163, %v1162
    %v1433 = vpack.c.b16 %v1165, %v1164
    %v1434 = vpack.c.b16 %v1167, %v1166
    %v1435 = vpack.c.b16 %v1169, %v1168
    %v1436 = vpack.c.b16 %v1171, %v1170
    %v1437 = vpack.c.b16 %v1173, %v1172
    %v1438 = vpack.c.b16 %v1175, %v1174
    %v1439 = vpack.c.b16 %v1177, %v1176
    %v1440 = vpack.c.b16 %v1179, %v1178
    %v1441 = vpack.c.b16 %v1181, %v1180
    %v1442 = vpack.c.b16 %v1183, %v1182
    %v1443 = vpack.c.b16 %v1185, %v1184
    %v1444 = vpack.c.b16 %v1187, %v1186
    %v1445 = vpack.c.b16 %v1189, %v1188
    %v1446 = vpack.c.b16 %v1191, %v1190
    %v1447 = vpack.c.b16 %v1193, %v1192
    %v1448 = vpack.c.b16 %v1195, %v1194
    %v1449 = vpack.c.b16 %v1197, %v1196
    %v1450 = vpack.c.b16 %v1199, %v1198
    %v1451 = vpack.c.b16 %v1201, %v1200
    %v1452 = vpack.c.b16 %v1203, %v1202
    %v1453 = vpack.c.b16 %v1205, %v1204
    %v1454 = vpack.c.b16 %v1207, %v1206
    %v1455 = vpack.c.b16 %v1209, %v1208
    %v1456 = vpack.c.b16 %v1211, %v1210
    %v1457 = vpack.c.b16 %v1213, %v1212
    %v1458 = vpack.c.b16 %v1215, %v1214
    %v1459 = vpack.c.b16 %v1217, %v1216
    %v1460 = vpack.c.b16 %v1219, %v1218
    %v1461 = vpack.c.b16 %v1221, %v1220
    %v1462 = vpack.c.b16 %v1223, %v1222
    %v1463 = vpack.c.b16 %v1225, %v1224
    %v1464 = vpack.c.b16 %v1227, %v1226
    %v1465 = vpack.c.b16 %v1229, %v1228
    %v1466 = vpack.c.b16 %v1231, %v1230
    %v1467 = vpack.c.b16 %v1233, %v1232
    %v1468 = vpack.c.b16 %v1235, %v1234
    %v1469 = vpack.c.b16 %v1237, %v1236
    %v1470 = vpack.c.b16 %v1239, %v1238
    %v1471 = vpack.c.b16 %v1241, %v1240
    %v1472 = vpack.c.b16 %v1243, %v1242
    %v1473 = vpack.c.b16 %v1245, %v1244
    %v1474 = vpack.c.b16 %v1247, %v1246
    %v1475 = vpack.c.b16 %v1249, %v1248
    %v1476 = vpack.c.b16 %v1251, %v1250
    %v1477 = vpack.c.b16 %v1253, %v1252
    %v1478 = vpack.c.b16 %v1255, %v1254
    %v1479 = vpack.c.b16 %v1257, %v1256
    %v1480 = vpack.c.b16 %v1259, %v1258
    %v1481 = vpack.c.b16 %v1261, %v1260
    %v1482 = vpack.c.b16 %v1263, %v1262
    %v1483 = vpack.c.b16 %v1265, %v1264
    %v1484 = vpack.c.b16 %v1267, %v1266
    %v1485 = vpack.c.b16 %v1269, %v1268
    %v1486 = vpack.c.b16 %v1271, %v1270
    %v1487 = vpack.c.b16 %v1273, %v1272
    %v1488 = vpack.c.b16 %v1275, %v1274
    %v1489 = vpack.c.b16 %v1277, %v1276
    %v1490 = vpack.c.b16 %v1279, %v1278
    %v1491 = vpack.c.b16 %v1281, %v1280
    %v1492 = vpack.c.b16 %v1283, %v1282
    %v1493 = vpack.c.b16 %v1285, %v1284
    %v1494 = vpack.c.b16 %v1287, %v1286
    %v1495 = vpack.c.b16 %v1289, %v1288
    %v1496 = vpack.c.b16 %v1291, %v1290
    %v1497 = vpack.c.b16 %v1293, %v1292
    %v1498 = vpack.c.b16 %v1295, %v1294
    %v1499 = vpack.c.b16 %v1297, %v1296
    %v1500 = vpack.c.b16 %v1299, %v1298
    %v1501 = vpack.c.b16 %v1301, %v1300
    %v1502 = vpack.c.b16 %v1303, %v1302
    %v1503 = vpack.c.b16 %v1305, %v1304
    %v1504 = vpack.c.b16 %v1307, %v1306
    %v1505 = vpack.c.b16 %v1309, %v1308
    %v1506 = vpack.c.b16 %v1311, %v1310
    %v1507 = vpack.c.b16 %v1313, %v1312
    %v1508 = vpack.c.b16 %v1315, %v1314
    %v1509 = vpack.c.b16 %v1317, %v1316
    %1702 = vmatpush.bf16.msra.mxu0 %v1325
    %1703 = vmatpush.bf16.msra.mxu0 %v1324
    %1704 = vmatpush.bf16.msra.mxu0 %v1323
    %1705 = vmatpush.bf16.msra.mxu0 %v1322
    %1706 = vmatpush.bf16.msra.mxu0 %v1321
    %1707 = vmatpush.bf16.msra.mxu0 %v1320
    %1708 = vmatpush.bf16.msra.mxu0 %v1319
    %1709 = vmatpush.bf16.msra.mxu0 %v1318
    %1710 = vmatmul.bf16.gmra.mxu0 %v138
    %v1711 = vpop.f32.mrf.mxu0
    %v1712 = vadd.f32 %v548, %v1711
    %v1713 = vpop.f32.mrf.mxu0
    %v1714 = vadd.f32 %v548, %v1713
    %1715 = vdwg.mxu0
    %1716 = vmatpush.bf16.msra.mxu0 %v1333
    %1717 = vmatpush.bf16.msra.mxu0 %v1332
    %1718 = vmatpush.bf16.msra.mxu0 %v1331
    %1719 = vmatpush.bf16.msra.mxu0 %v1330
    %1720 = vmatpush.bf16.msra.mxu0 %v1329
    %1721 = vmatpush.bf16.msra.mxu0 %v1328
    %1722 = vmatpush.bf16.msra.mxu0 %v1327
    %1723 = vmatpush.bf16.msra.mxu0 %v1326
    %1724 = vmatmul.bf16.gmra.mxu0 %v139
    %v1725 = vpop.f32.mrf.mxu0
    %v1726 = vadd.f32 %v1712, %v1725
    %v1727 = vpop.f32.mrf.mxu0
    %v1728 = vadd.f32 %v1714, %v1727
    %1729 = vdwg.mxu0
    %1730 = vmatpush.bf16.msra.mxu0 %v1341
    %1731 = vmatpush.bf16.msra.mxu0 %v1340
    %1732 = vmatpush.bf16.msra.mxu0 %v1339
    %1733 = vmatpush.bf16.msra.mxu0 %v1338
    %1734 = vmatpush.bf16.msra.mxu0 %v1337
    %1735 = vmatpush.bf16.msra.mxu0 %v1336
    %1736 = vmatpush.bf16.msra.mxu0 %v1335
    %1737 = vmatpush.bf16.msra.mxu0 %v1334
    %1738 = vmatmul.bf16.gmra.mxu0 %v140
    %v1739 = vpop.f32.mrf.mxu0
    %v1740 = vadd.f32 %v1726, %v1739
    %v1741 = vpop.f32.mrf.mxu0
    %v1742 = vadd.f32 %v1728, %v1741
    %1743 = vdwg.mxu0
    %1744 = vmatpush.bf16.msra.mxu0 %v1349
    %1745 = vmatpush.bf16.msra.mxu0 %v1348
    %1746 = vmatpush.bf16.msra.mxu0 %v1347
    %1747 = vmatpush.bf16.msra.mxu0 %v1346
    %1748 = vmatpush.bf16.msra.mxu0 %v1345
    %1749 = vmatpush.bf16.msra.mxu0 %v1344
    %1750 = vmatpush.bf16.msra.mxu0 %v1343
    %1751 = vmatpush.bf16.msra.mxu0 %v1342
    %1752 = vmatmul.bf16.gmra.mxu0 %v141
    %v1753 = vpop.f32.mrf.mxu0
    %v1754 = vadd.f32 %v1740, %v1753
    %v1755 = vpop.f32.mrf.mxu0
    %v1756 = vadd.f32 %v1742, %v1755
    %1757 = vdwg.mxu0
    %1758 = vmatpush.bf16.msra.mxu0 %v1357
    %1759 = vmatpush.bf16.msra.mxu0 %v1356
    %1760 = vmatpush.bf16.msra.mxu0 %v1355
    %1761 = vmatpush.bf16.msra.mxu0 %v1354
    %1762 = vmatpush.bf16.msra.mxu0 %v1353
    %1763 = vmatpush.bf16.msra.mxu0 %v1352
    %1764 = vmatpush.bf16.msra.mxu0 %v1351
    %1765 = vmatpush.bf16.msra.mxu0 %v1350
    %1766 = vmatmul.bf16.gmra.mxu0 %v142
    %v1767 = vpop.f32.mrf.mxu0
    %v1768 = vadd.f32 %v1754, %v1767
    %v1769 = vpop.f32.mrf.mxu0
    %v1770 = vadd.f32 %v1756, %v1769
    %1771 = vdwg.mxu0
    %1772 = vmatpush.bf16.msra.mxu0 %v1365
    %1773 = vmatpush.bf16.msra.mxu0 %v1364
    %1774 = vmatpush.bf16.msra.mxu0 %v1363
    %1775 = vmatpush.bf16.msra.mxu0 %v1362
    %1776 = vmatpush.bf16.msra.mxu0 %v1361
    %1777 = vmatpush.bf16.msra.mxu0 %v1360
    %1778 = vmatpush.bf16.msra.mxu0 %v1359
    %1779 = vmatpush.bf16.msra.mxu0 %v1358
    %1780 = vmatmul.bf16.gmra.mxu0 %v143
    %v1781 = vpop.f32.mrf.mxu0
    %v1782 = vadd.f32 %v1768, %v1781
    %v1783 = vpop.f32.mrf.mxu0
    %v1784 = vadd.f32 %v1770, %v1783
    %1785 = vdwg.mxu0
    %1786 = vmatpush.bf16.msra.mxu0 %v1373
    %1787 = vmatpush.bf16.msra.mxu0 %v1372
    %1788 = vmatpush.bf16.msra.mxu0 %v1371
    %1789 = vmatpush.bf16.msra.mxu0 %v1370
    %1790 = vmatpush.bf16.msra.mxu0 %v1369
    %1791 = vmatpush.bf16.msra.mxu0 %v1368
    %1792 = vmatpush.bf16.msra.mxu0 %v1367
    %1793 = vmatpush.bf16.msra.mxu0 %v1366
    %1794 = vmatmul.bf16.gmra.mxu0 %v144
    %v1795 = vpop.f32.mrf.mxu0
    %v1796 = vadd.f32 %v1782, %v1795
    %v1797 = vpop.f32.mrf.mxu0
    %v1798 = vadd.f32 %v1784, %v1797
    %1799 = vdwg.mxu0
    %1800 = vmatpush.bf16.msra.mxu0 %v1381
    %1801 = vmatpush.bf16.msra.mxu0 %v1380
    %1802 = vmatpush.bf16.msra.mxu0 %v1379
    %1803 = vmatpush.bf16.msra.mxu0 %v1378
    %1804 = vmatpush.bf16.msra.mxu0 %v1377
    %1805 = vmatpush.bf16.msra.mxu0 %v1376
    %1806 = vmatpush.bf16.msra.mxu0 %v1375
    %1807 = vmatpush.bf16.msra.mxu0 %v1374
    %1808 = vmatmul.bf16.gmra.mxu0 %v145
    %v1809 = vpop.f32.mrf.mxu0
    %v1810 = vadd.f32 %v1796, %v1809
    %v1811 = vpop.f32.mrf.mxu0
    %v1812 = vadd.f32 %v1798, %v1811
    %1813 = vdwg.mxu0
    %1814 = vmatpush.bf16.msra.mxu0 %v1389
    %1815 = vmatpush.bf16.msra.mxu0 %v1388
    %1816 = vmatpush.bf16.msra.mxu0 %v1387
    %1817 = vmatpush.bf16.msra.mxu0 %v1386
    %1818 = vmatpush.bf16.msra.mxu0 %v1385
    %1819 = vmatpush.bf16.msra.mxu0 %v1384
    %1820 = vmatpush.bf16.msra.mxu0 %v1383
    %1821 = vmatpush.bf16.msra.mxu0 %v1382
    %1822 = vmatmul.bf16.gmra.mxu0 %v146
    %v1823 = vpop.f32.mrf.mxu0
    %v1824 = vadd.f32 %v1810, %v1823
    %v1825 = vpop.f32.mrf.mxu0
    %v1826 = vadd.f32 %v1812, %v1825
    %1827 = vdwg.mxu0
    %1828 = vmatpush.bf16.msra.mxu0 %v1397
    %1829 = vmatpush.bf16.msra.mxu0 %v1396
    %1830 = vmatpush.bf16.msra.mxu0 %v1395
    %1831 = vmatpush.bf16.msra.mxu0 %v1394
    %1832 = vmatpush.bf16.msra.mxu0 %v1393
    %1833 = vmatpush.bf16.msra.mxu0 %v1392
    %1834 = vmatpush.bf16.msra.mxu0 %v1391
    %1835 = vmatpush.bf16.msra.mxu0 %v1390
    %1836 = vmatmul.bf16.gmra.mxu0 %v147
    %v1837 = vpop.f32.mrf.mxu0
    %v1838 = vadd.f32 %v1824, %v1837
    %v1839 = vpop.f32.mrf.mxu0
    %v1840 = vadd.f32 %v1826, %v1839
    %1841 = vdwg.mxu0
    %1842 = vmatpush.bf16.msra.mxu0 %v1405
    %1843 = vmatpush.bf16.msra.mxu0 %v1404
    %1844 = vmatpush.bf16.msra.mxu0 %v1403
    %1845 = vmatpush.bf16.msra.mxu0 %v1402
    %1846 = vmatpush.bf16.msra.mxu0 %v1401
    %1847 = vmatpush.bf16.msra.mxu0 %v1400
    %1848 = vmatpush.bf16.msra.mxu0 %v1399
    %1849 = vmatpush.bf16.msra.mxu0 %v1398
    %1850 = vmatmul.bf16.gmra.mxu0 %v148
    %v1851 = vpop.f32.mrf.mxu0
    %v1852 = vadd.f32 %v1838, %v1851
    %v1853 = vpop.f32.mrf.mxu0
    %v1854 = vadd.f32 %v1840, %v1853
    %1855 = vdwg.mxu0
    %1856 = vmatpush.bf16.msra.mxu0 %v1413
    %1857 = vmatpush.bf16.msra.mxu0 %v1412
    %1858 = vmatpush.bf16.msra.mxu0 %v1411
    %1859 = vmatpush.bf16.msra.mxu0 %v1410
    %1860 = vmatpush.bf16.msra.mxu0 %v1409
    %1861 = vmatpush.bf16.msra.mxu0 %v1408
    %1862 = vmatpush.bf16.msra.mxu0 %v1407
    %1863 = vmatpush.bf16.msra.mxu0 %v1406
    %1864 = vmatmul.bf16.gmra.mxu0 %v149
    %v1865 = vpop.f32.mrf.mxu0
    %v1866 = vadd.f32 %v1852, %v1865
    %v1867 = vpop.f32.mrf.mxu0
    %v1868 = vadd.f32 %v1854, %v1867
    %1869 = vdwg.mxu0
    %1870 = vmatpush.bf16.msra.mxu0 %v1421
    %1871 = vmatpush.bf16.msra.mxu0 %v1420
    %1872 = vmatpush.bf16.msra.mxu0 %v1419
    %1873 = vmatpush.bf16.msra.mxu0 %v1418
    %1874 = vmatpush.bf16.msra.mxu0 %v1417
    %1875 = vmatpush.bf16.msra.mxu0 %v1416
    %1876 = vmatpush.bf16.msra.mxu0 %v1415
    %1877 = vmatpush.bf16.msra.mxu0 %v1414
    %1878 = vmatmul.bf16.gmra.mxu0 %v150
    %v1879 = vpop.f32.mrf.mxu0
    %v1880 = vadd.f32 %v1866, %v1879
    %v1881 = vpop.f32.mrf.mxu0
    %v1882 = vadd.f32 %v1868, %v1881
    %1883 = vdwg.mxu0
    %1884 = vmatpush.bf16.msra.mxu0 %v1429
    %1885 = vmatpush.bf16.msra.mxu0 %v1428
    %1886 = vmatpush.bf16.msra.mxu0 %v1427
    %1887 = vmatpush.bf16.msra.mxu0 %v1426
    %1888 = vmatpush.bf16.msra.mxu0 %v1425
    %1889 = vmatpush.bf16.msra.mxu0 %v1424
    %1890 = vmatpush.bf16.msra.mxu0 %v1423
    %1891 = vmatpush.bf16.msra.mxu0 %v1422
    %1892 = vmatmul.bf16.gmra.mxu0 %v151
    %v1893 = vpop.f32.mrf.mxu0
    %v1894 = vadd.f32 %v1880, %v1893
    %v1895 = vpop.f32.mrf.mxu0
    %v1896 = vadd.f32 %v1882, %v1895
    %1897 = vdwg.mxu0
    %1898 = vmatpush.bf16.msra.mxu0 %v1437
    %1899 = vmatpush.bf16.msra.mxu0 %v1436
    %1900 = vmatpush.bf16.msra.mxu0 %v1435
    %1901 = vmatpush.bf16.msra.mxu0 %v1434
    %1902 = vmatpush.bf16.msra.mxu0 %v1433
    %1903 = vmatpush.bf16.msra.mxu0 %v1432
    %1904 = vmatpush.bf16.msra.mxu0 %v1431
    %1905 = vmatpush.bf16.msra.mxu0 %v1430
    %1906 = vmatmul.bf16.gmra.mxu0 %v152
    %v1907 = vpop.f32.mrf.mxu0
    %v1908 = vadd.f32 %v1894, %v1907
    %v1909 = vpop.f32.mrf.mxu0
    %v1910 = vadd.f32 %v1896, %v1909
    %1911 = vdwg.mxu0
    %1912 = vmatpush.bf16.msra.mxu0 %v1445
    %1913 = vmatpush.bf16.msra.mxu0 %v1444
    %1914 = vmatpush.bf16.msra.mxu0 %v1443
    %1915 = vmatpush.bf16.msra.mxu0 %v1442
    %1916 = vmatpush.bf16.msra.mxu0 %v1441
    %1917 = vmatpush.bf16.msra.mxu0 %v1440
    %1918 = vmatpush.bf16.msra.mxu0 %v1439
    %1919 = vmatpush.bf16.msra.mxu0 %v1438
    %1920 = vmatmul.bf16.gmra.mxu0 %v153
    %v1921 = vpop.f32.mrf.mxu0
    %v1922 = vadd.f32 %v1908, %v1921
    %v1923 = vpop.f32.mrf.mxu0
    %v1924 = vadd.f32 %v1910, %v1923
    %1925 = vdwg.mxu0
    %1926 = vmatpush.bf16.msra.mxu0 %v1453
    %1927 = vmatpush.bf16.msra.mxu0 %v1452
    %1928 = vmatpush.bf16.msra.mxu0 %v1451
    %1929 = vmatpush.bf16.msra.mxu0 %v1450
    %1930 = vmatpush.bf16.msra.mxu0 %v1449
    %1931 = vmatpush.bf16.msra.mxu0 %v1448
    %1932 = vmatpush.bf16.msra.mxu0 %v1447
    %1933 = vmatpush.bf16.msra.mxu0 %v1446
    %1934 = vmatmul.bf16.gmra.mxu0 %v154
    %v1935 = vpop.f32.mrf.mxu0
    %v1936 = vadd.f32 %v1922, %v1935
    %v1937 = vpop.f32.mrf.mxu0
    %v1938 = vadd.f32 %v1924, %v1937
    %1939 = vdwg.mxu0
    %1940 = vmatpush.bf16.msra.mxu0 %v1461
    %1941 = vmatpush.bf16.msra.mxu0 %v1460
    %1942 = vmatpush.bf16.msra.mxu0 %v1459
    %1943 = vmatpush.bf16.msra.mxu0 %v1458
    %1944 = vmatpush.bf16.msra.mxu0 %v1457
    %1945 = vmatpush.bf16.msra.mxu0 %v1456
    %1946 = vmatpush.bf16.msra.mxu0 %v1455
    %1947 = vmatpush.bf16.msra.mxu0 %v1454
    %1948 = vmatmul.bf16.gmra.mxu0 %v155
    %v1949 = vpop.f32.mrf.mxu0
    %v1950 = vadd.f32 %v1936, %v1949
    %v1951 = vpop.f32.mrf.mxu0
    %v1952 = vadd.f32 %v1938, %v1951
    %1953 = vdwg.mxu0
    %1954 = vmatpush.bf16.msra.mxu0 %v1469
    %1955 = vmatpush.bf16.msra.mxu0 %v1468
    %1956 = vmatpush.bf16.msra.mxu0 %v1467
    %1957 = vmatpush.bf16.msra.mxu0 %v1466
    %1958 = vmatpush.bf16.msra.mxu0 %v1465
    %1959 = vmatpush.bf16.msra.mxu0 %v1464
    %1960 = vmatpush.bf16.msra.mxu0 %v1463
    %1961 = vmatpush.bf16.msra.mxu0 %v1462
    %1962 = vmatmul.bf16.gmra.mxu0 %v156
    %v1963 = vpop.f32.mrf.mxu0
    %v1964 = vadd.f32 %v1950, %v1963
    %v1965 = vpop.f32.mrf.mxu0
    %v1966 = vadd.f32 %v1952, %v1965
    %1967 = vdwg.mxu0
    %1968 = vmatpush.bf16.msra.mxu0 %v1477
    %1969 = vmatpush.bf16.msra.mxu0 %v1476
    %1970 = vmatpush.bf16.msra.mxu0 %v1475
    %1971 = vmatpush.bf16.msra.mxu0 %v1474
    %1972 = vmatpush.bf16.msra.mxu0 %v1473
    %1973 = vmatpush.bf16.msra.mxu0 %v1472
    %1974 = vmatpush.bf16.msra.mxu0 %v1471
    %1975 = vmatpush.bf16.msra.mxu0 %v1470
    %1976 = vmatmul.bf16.gmra.mxu0 %v157
    %v1977 = vpop.f32.mrf.mxu0
    %v1978 = vadd.f32 %v1964, %v1977
    %v1979 = vpop.f32.mrf.mxu0
    %v1980 = vadd.f32 %v1966, %v1979
    %1981 = vdwg.mxu0
    %1982 = vmatpush.bf16.msra.mxu0 %v1485
    %1983 = vmatpush.bf16.msra.mxu0 %v1484
    %1984 = vmatpush.bf16.msra.mxu0 %v1483
    %1985 = vmatpush.bf16.msra.mxu0 %v1482
    %1986 = vmatpush.bf16.msra.mxu0 %v1481
    %1987 = vmatpush.bf16.msra.mxu0 %v1480
    %1988 = vmatpush.bf16.msra.mxu0 %v1479
    %1989 = vmatpush.bf16.msra.mxu0 %v1478
    %1990 = vmatmul.bf16.gmra.mxu0 %v158
    %v1991 = vpop.f32.mrf.mxu0
    %v1992 = vadd.f32 %v1978, %v1991
    %v1993 = vpop.f32.mrf.mxu0
    %v1994 = vadd.f32 %v1980, %v1993
    %1995 = vdwg.mxu0
    %1996 = vmatpush.bf16.msra.mxu0 %v1493
    %1997 = vmatpush.bf16.msra.mxu0 %v1492
    %1998 = vmatpush.bf16.msra.mxu0 %v1491
    %1999 = vmatpush.bf16.msra.mxu0 %v1490
    %2000 = vmatpush.bf16.msra.mxu0 %v1489
    %2001 = vmatpush.bf16.msra.mxu0 %v1488
    %2002 = vmatpush.bf16.msra.mxu0 %v1487
    %2003 = vmatpush.bf16.msra.mxu0 %v1486
    %2004 = vmatmul.bf16.gmra.mxu0 %v159
    %v2005 = vpop.f32.mrf.mxu0
    %v2006 = vadd.f32 %v1992, %v2005
    %v2007 = vpop.f32.mrf.mxu0
    %v2008 = vadd.f32 %v1994, %v2007
    %2009 = vdwg.mxu0
    %2010 = vmatpush.bf16.msra.mxu0 %v1501
    %2011 = vmatpush.bf16.msra.mxu0 %v1500
    %2012 = vmatpush.bf16.msra.mxu0 %v1499
    %2013 = vmatpush.bf16.msra.mxu0 %v1498
    %2014 = vmatpush.bf16.msra.mxu0 %v1497
    %2015 = vmatpush.bf16.msra.mxu0 %v1496
    %2016 = vmatpush.bf16.msra.mxu0 %v1495
    %2017 = vmatpush.bf16.msra.mxu0 %v1494
    %2018 = vmatmul.bf16.gmra.mxu0 %v160
    %v2019 = vpop.f32.mrf.mxu0
    %v2020 = vadd.f32 %v2006, %v2019
    %v2021 = vpop.f32.mrf.mxu0
    %v2022 = vadd.f32 %v2008, %v2021
    %2023 = vdwg.mxu0
    %2024 = vmatpush.bf16.msra.mxu0 %v1509
    %2025 = vmatpush.bf16.msra.mxu0 %v1508
    %2026 = vmatpush.bf16.msra.mxu0 %v1507
    %2027 = vmatpush.bf16.msra.mxu0 %v1506
    %2028 = vmatpush.bf16.msra.mxu0 %v1505
    %2029 = vmatpush.bf16.msra.mxu0 %v1504
    %2030 = vmatpush.bf16.msra.mxu0 %v1503
    %2031 = vmatpush.bf16.msra.mxu0 %v1502
    %2032 = vmatmul.bf16.gmra.mxu0 %v161
    %v2033 = vpop.f32.mrf.mxu0
    %v2034 = vadd.f32 %v2020, %v2033
    %v2035 = vpop.f32.mrf.mxu0
    %v2036 = vadd.f32 %v2022, %v2035
    %2037 = vdwg.mxu0
    %v2038 = vmax.f32 %v2034, 0.0
    %v2039 = vmax.f32 %v2036, 0.0
    %v2040 = vpack.c.bf16 %v2039, %v2038
    %v2041 = vld [vmem:[#allocation7] sm:$0xf]
    %v2042 = vld [vmem:[#allocation7 + $0x4] sm:$0xf]
    %v2043 = vld [vmem:[#allocation7 + $0x8] sm:$0xf]
    %v2044 = vld [vmem:[#allocation7 + $0xc] sm:$0xf]
    %v2045 = vld [vmem:[#allocation7 + $0x10] sm:$0xf]
    %v2046 = vld [vmem:[#allocation7 + $0x14] sm:$0xf]
    %v2047 = vld [vmem:[#allocation7 + $0x18] sm:$0xf]
    %v2048 = vld [vmem:[#allocation7 + $0x1c] sm:$0xf]
    %v2049 = vld [vmem:[#allocation7 + $0x20] sm:$0xf]
    %v2050 = vld [vmem:[#allocation7 + $0x24] sm:$0xf]
    %v2051 = vld [vmem:[#allocation7 + $0x28] sm:$0xf]
    %v2052 = vld [vmem:[#allocation7 + $0x2c] sm:$0xf]
    %v2053 = vld [vmem:[#allocation7 + $0x30] sm:$0xf]
    %v2054 = vld [vmem:[#allocation7 + $0x34] sm:$0xf]
    %v2055 = vld [vmem:[#allocation7 + $0x38] sm:$0xf]
    %v2056 = vld [vmem:[#allocation7 + $0x3c] sm:$0xf]
    %v2057 = vld [vmem:[%s4] sm:$0x1]
    %v2059 = vperm.slane %v2057, 0
    %v2077 = vunpack.c.l.b16 %v2041
    %v2078 = vunpack.c.l.b16 %v2042
    %v2079 = vunpack.c.l.b16 %v2043
    %v2080 = vunpack.c.l.b16 %v2044
    %v2081 = vunpack.c.l.b16 %v2045
    %v2082 = vunpack.c.l.b16 %v2046
    %v2083 = vunpack.c.l.b16 %v2047
    %v2084 = vunpack.c.l.b16 %v2048
    %v2085 = vunpack.c.l.b16 %v2049
    %v2086 = vunpack.c.l.b16 %v2050
    %v2087 = vunpack.c.l.b16 %v2051
    %v2088 = vunpack.c.l.b16 %v2052
    %v2089 = vunpack.c.l.b16 %v2053
    %v2090 = vunpack.c.l.b16 %v2054
    %v2091 = vunpack.c.l.b16 %v2055
    %v2092 = vunpack.c.l.b16 %v2056
    %v2093 = vpack.c.b16 %v2078, %v2077
    %v2094 = vpack.c.b16 %v2080, %v2079
    %v2095 = vpack.c.b16 %v2082, %v2081
    %v2096 = vpack.c.b16 %v2084, %v2083
    %v2097 = vpack.c.b16 %v2086, %v2085
    %v2098 = vpack.c.b16 %v2088, %v2087
    %v2099 = vpack.c.b16 %v2090, %v2089
    %v2100 = vpack.c.b16 %v2092, %v2091
    %2109 = vmatpush.bf16.msra.mxu0 %v2100
    %2110 = vmatpush.bf16.msra.mxu0 %v2099
    %2111 = vmatpush.bf16.msra.mxu0 %v2098
    %2112 = vmatpush.bf16.msra.mxu0 %v2097
    %2113 = vmatpush.bf16.msra.mxu0 %v2096
    %2114 = vmatpush.bf16.msra.mxu0 %v2095
    %2115 = vmatpush.bf16.msra.mxu0 %v2094
    %2116 = vmatpush.bf16.msra.mxu0 %v2093
    %2117 = vmatmul.bf16.gmra.mxu0 %v2040
    %v2118 = vpop.f32.mrf.mxu0
    %v2119 = vadd.f32 %v2059, %v2118
    %v2120 = vpop.f32.mrf.mxu0
    %v2121 = vadd.f32 %v2059, %v2120
    %2122 = vdwg.mxu0
    %v2123 = vmax.f32 %v2119, 0.0
    %v2124 = vmax.f32 %v2121, 0.0
    %v2125 = vpack.c.bf16 %v2124, %v2123
    %v2126 = vld [vmem:[#allocation8] sm:$0xf]
    %v2127 = vld [vmem:[#allocation8 + $0x4] sm:$0xf]
    %v2128 = vld [vmem:[#allocation8 + $0x8] sm:$0xf]
    %v2129 = vld [vmem:[#allocation8 + $0xc] sm:$0xf]
    %v2130 = vld [vmem:[#allocation8 + $0x10] sm:$0xf]
    %v2131 = vld [vmem:[#allocation8 + $0x14] sm:$0xf]
    %v2132 = vld [vmem:[#allocation8 + $0x18] sm:$0xf]
    %v2133 = vld [vmem:[#allocation8 + $0x1c] sm:$0xf]
    %v2134 = vld [vmem:[#allocation8 + $0x20] sm:$0xf]
    %v2135 = vld [vmem:[#allocation8 + $0x24] sm:$0xf]
    %v2136 = vld [vmem:[#allocation8 + $0x28] sm:$0xf]
    %v2137 = vld [vmem:[#allocation8 + $0x2c] sm:$0xf]
    %v2138 = vld [vmem:[#allocation8 + $0x30] sm:$0xf]
    %v2139 = vld [vmem:[#allocation8 + $0x34] sm:$0xf]
    %v2140 = vld [vmem:[#allocation8 + $0x38] sm:$0xf]
    %v2141 = vld [vmem:[#allocation8 + $0x3c] sm:$0xf]
    %v2142 = vld [vmem:[%s6] sm:$0x1]
    %v2144 = vperm.slane %v2142, 0
    %v2162 = vunpack.c.l.b16 %v2126
    %v2163 = vunpack.c.l.b16 %v2127
    %v2164 = vunpack.c.l.b16 %v2128
    %v2165 = vunpack.c.l.b16 %v2129
    %v2166 = vunpack.c.l.b16 %v2130
    %v2167 = vunpack.c.l.b16 %v2131
    %v2168 = vunpack.c.l.b16 %v2132
    %v2169 = vunpack.c.l.b16 %v2133
    %v2170 = vunpack.c.l.b16 %v2134
    %v2171 = vunpack.c.l.b16 %v2135
    %v2172 = vunpack.c.l.b16 %v2136
    %v2173 = vunpack.c.l.b16 %v2137
    %v2174 = vunpack.c.l.b16 %v2138
    %v2175 = vunpack.c.l.b16 %v2139
    %v2176 = vunpack.c.l.b16 %v2140
    %v2177 = vunpack.c.l.b16 %v2141
    %v2178 = vpack.c.b16 %v2163, %v2162
    %v2179 = vpack.c.b16 %v2165, %v2164
    %v2180 = vpack.c.b16 %v2167, %v2166
    %v2181 = vpack.c.b16 %v2169, %v2168
    %v2182 = vpack.c.b16 %v2171, %v2170
    %v2183 = vpack.c.b16 %v2173, %v2172
    %v2184 = vpack.c.b16 %v2175, %v2174
    %v2185 = vpack.c.b16 %v2177, %v2176
    %2194 = vmatpush.bf16.msra.mxu0 %v2185
    %2195 = vmatpush.bf16.msra.mxu0 %v2184
    %2196 = vmatpush.bf16.msra.mxu0 %v2183
    %2197 = vmatpush.bf16.msra.mxu0 %v2182
    %2198 = vmatpush.bf16.msra.mxu0 %v2181
    %2199 = vmatpush.bf16.msra.mxu0 %v2180
    %2200 = vmatpush.bf16.msra.mxu0 %v2179
    %2201 = vmatpush.bf16.msra.mxu0 %v2178
    %2202 = vmatmul.bf16.gmra.mxu0 %v2125
    %v2203 = vpop.f32.mrf.mxu0
    %v2204 = vadd.f32 %v2144, %v2203
    %v2205 = vpop.f32.mrf.mxu0
    %v2206 = vadd.f32 %v2144, %v2205
    %2207 = vdwg.mxu0
    %2208 = vst [vmem:[#allocation10] sm:$0xff] %v2204
    %2209 = vst [vmem:[#allocation10 + $0x8] sm:$0xff] %v2206
    // Predicated region
    $region46: #{tpu_custom_call.1} parent=1 // pred_check
      _
    $region47: #{tpu_custom_call.1} parent=1 // pred_check_branch
      %2211 = sbr.rel (0) target = $region49
    $region48: #{tpu_custom_call.1} parent=1 // pred_region
      %2213 = vsyncadd [#allocation4], 0
      %s2214 = sshll.u32 [#allocation10], 4
      %s2215 = int_to_ptr.vmem [resolvable:$true] %s2214
      %s2216 = sshll.u32 %s7, 4
      %s2217 = int_to_ptr.hbm [resolvable:$true] %s2216
      %2222 = dma.vmem_to_hbm [thread:$0]  %s2215, 256, %s2217, [#allocation4], 128, 128, 8
    $region49: #{tpu_custom_call.1} parent=1 // pred_fallthru
      _
    // Predicated region
    $region50: #{tpu_custom_call.1} parent=1 // pred_check
      _
    $region51: #{tpu_custom_call.1} parent=1 // pred_check_branch
      %2224 = sbr.rel (0) target = $region53
    $region52: #{tpu_custom_call.1} parent=1 // pred_region
      %2226 = dma.done [#allocation4], 256
    $region53: #{tpu_custom_call.1} parent=1 // pred_fallthru
      _
    %2227 = vsyncpa [#allocation3], 1
    %2228 = vsyncpa [#allocation6], 1
    %2229 = vsyncpa [#allocation9], 1
    %2230 = vsyncpa [#allocation4], 1

</llo_original>
